<compile_context>
chip_gen: v7x
topology: tpu7x:2x2x1
jax: 0.10.0
libtpu: 0.0.40
codegen_flags: <defaults>
</compile_context>

<pallas_src>
import jax
import jax.numpy as jnp
from jax.experimental import pallas as pl
from jax.experimental.pallas import tpu as pltpu

INPUT_SIZE = 784
HIDDEN_SIZE = 500
NUM_CLASSES = 10

# Lane/MXU-padded sizes.
IN_PAD = 896     # 7 * 128
HID_PAD = 512    # 4 * 128
OUT_PAD = 128    # 1 * 128

MAX_TB = 128     # batch tile


def _round_up(x, m):
    return ((x + m - 1) // m) * m


def _mlp_kernel(x_ref, w1_ref, b1_ref, w2_ref, b2_ref, out_ref, hidden_ref):
    # fc1: (tb, IN_PAD) @ (IN_PAD, HID_PAD)  -- bf16 MXU operands, f32 accumulate.
    x = x_ref[...].astype(jnp.bfloat16)
    h = jnp.dot(x, w1_ref[...], preferred_element_type=jnp.float32)
    # bias + ReLU in f32 (VPU-friendly on all chips).
    h = jnp.maximum(h + b1_ref[...], 0.0)
    # hidden = out.clone()  (post-ReLU activations), tiled writeback.
    hidden_ref[...] = h
    # fc2: (tb, HID_PAD) @ (HID_PAD, OUT_PAD)
    o = jnp.dot(h.astype(jnp.bfloat16), w2_ref[...],
                preferred_element_type=jnp.float32)
    out_ref[...] = o + b2_ref[...]


def neural_net_forward(x, w1, b1, w2, b2):
    """Forward pass of NeuralNet.

    Args:
      x : (B, INPUT_SIZE) float32
      w1: (IN_PAD, HID_PAD)  bfloat16  (zero-padded, stored (in, out))
      b1: (HID_PAD,)         float32   (zero-padded)
      w2: (HID_PAD, OUT_PAD) bfloat16  (zero-padded)
      b2: (OUT_PAD,)         float32   (zero-padded)
    Returns:
      out    : (B, NUM_CLASSES) float32
      hidden : (B, HIDDEN_SIZE) float32
    """
    B = x.shape[0]
    tb = min(MAX_TB, _round_up(B, 8))          # batch tile (sublane multiple)
    B_pad = _round_up(B, tb)
    grid = (B_pad // tb,)

    # Pad x once in the wrapper (zeros * zero-padded weight rows contribute 0).
    x_pad = jnp.zeros((B_pad, IN_PAD), jnp.float32).at[:B, :INPUT_SIZE].set(x)
    b1_2d = b1.reshape(1, HID_PAD)
    b2_2d = b2.reshape(1, OUT_PAD)

    out_shapes = (
        jax.ShapeDtypeStruct((B_pad, OUT_PAD), jnp.float32),
        jax.ShapeDtypeStruct((B_pad, HID_PAD), jnp.float32),
    )

    out_pad, hidden_pad = pl.pallas_call(
        _mlp_kernel,
        out_shape=out_shapes,
        grid=grid,
        in_specs=[
            pl.BlockSpec((tb, IN_PAD), lambda i: (i, 0)),        # x: tiled over batch
            pl.BlockSpec((IN_PAD, HID_PAD), lambda i: (0, 0)),   # W1: resident
            pl.BlockSpec((1, HID_PAD), lambda i: (0, 0)),        # b1: resident
            pl.BlockSpec((HID_PAD, OUT_PAD), lambda i: (0, 0)),  # W2: resident
            pl.BlockSpec((1, OUT_PAD), lambda i: (0, 0)),        # b2: resident
        ],
        out_specs=(
            pl.BlockSpec((tb, OUT_PAD), lambda i: (i, 0)),       # out: tiled
            pl.BlockSpec((tb, HID_PAD), lambda i: (i, 0)),       # hidden: tiled
        ),
        compiler_params=pltpu.CompilerParams(
            dimension_semantics=("parallel",),
            vmem_limit_bytes=16 << 20,
        ),
    )(x_pad, w1, b1_2d, w2, b2_2d)

    return out_pad[:B, :NUM_CLASSES], hidden_pad[:B, :HIDDEN_SIZE]


def init_params(key):
    """nn.Linear-style uniform(-1/sqrt(fan_in), 1/sqrt(fan_in)) init.

    Weights are stored transposed vs PyTorch ((in, out) so kernel does x @ W),
    zero-padded to the lane-aligned shapes, and kept in bfloat16.
    """
    k1, k2, k3, k4 = jax.random.split(key, 4)
    bound1 = 1.0 / jnp.sqrt(jnp.float32(INPUT_SIZE))
    bound2 = 1.0 / jnp.sqrt(jnp.float32(HIDDEN_SIZE))

    w1 = jax.random.uniform(k1, (INPUT_SIZE, HIDDEN_SIZE), jnp.float32, -bound1, bound1)
    b1 = jax.random.uniform(k2, (HIDDEN_SIZE,), jnp.float32, -bound1, bound1)
    w2 = jax.random.uniform(k3, (HIDDEN_SIZE, NUM_CLASSES), jnp.float32, -bound2, bound2)
    b2 = jax.random.uniform(k4, (NUM_CLASSES,), jnp.float32, -bound2, bound2)

    # Zero-pad to lane/MXU multiples; weights in bf16, biases in f32.
    w1_p = jnp.zeros((IN_PAD, HID_PAD), jnp.bfloat16).at[:INPUT_SIZE, :HIDDEN_SIZE].set(
        w1.astype(jnp.bfloat16))
    b1_p = jnp.zeros((HID_PAD,), jnp.float32).at[:HIDDEN_SIZE].set(b1)
    w2_p = jnp.zeros((HID_PAD, OUT_PAD), jnp.bfloat16).at[:HIDDEN_SIZE, :NUM_CLASSES].set(
        w2.astype(jnp.bfloat16))
    b2_p = jnp.zeros((OUT_PAD,), jnp.float32).at[:NUM_CLASSES].set(b2)
    return w1_p, b1_p, w2_p, b2_p


if __name__ == "__main__":
    key = jax.random.PRNGKey(0)
    k_params, k_x = jax.random.split(key)
    w1, b1, w2, b2 = init_params(k_params)

    B = 8  # small batch for the demo (kernel scales to large B via the batch grid)
    x = jax.random.normal(k_x, (B, INPUT_SIZE), jnp.float32)

    out, hidden = neural_net_forward(x, w1, b1, w2, b2)
    out, hidden = jax.block_until_ready((out, hidden))

    # Pure-JAX reference with the same bf16-rounded matmul operands / f32 accumulate.
    xq = x.astype(jnp.bfloat16).astype(jnp.float32)
    w1f = w1[:INPUT_SIZE, :HIDDEN_SIZE].astype(jnp.float32)
    w2f = w2[:HIDDEN_SIZE, :NUM_CLASSES].astype(jnp.float32)
    h_ref = jnp.maximum(xq @ w1f + b1[:HIDDEN_SIZE], 0.0)
    out_ref = h_ref.astype(jnp.bfloat16).astype(jnp.float32) @ w2f + b2[:NUM_CLASSES]

    assert out.shape == (B, NUM_CLASSES) and hidden.shape == (B, HIDDEN_SIZE)
    assert jnp.allclose(hidden, h_ref, atol=1e-2, rtol=1e-2)
    assert jnp.allclose(out, out_ref, atol=1e-2, rtol=1e-2)

    print("KERNEL_OK")
</pallas_src>

<mosaic_0001>
module attributes {stable_mosaic.version = 11 : i64} {
  func.func @_mlp_kernel(%arg0: i32, %arg1: memref<8x896xf32, #tpu.memory_space<vmem>>, %arg2: memref<896x512xbf16, #tpu.memory_space<vmem>>, %arg3: memref<1x512xf32, #tpu.memory_space<vmem>>, %arg4: memref<512x128xbf16, #tpu.memory_space<vmem>>, %arg5: memref<1x128xf32, #tpu.memory_space<vmem>>, %arg6: memref<8x128xf32, #tpu.memory_space<vmem>>, %arg7: memref<8x512xf32, #tpu.memory_space<vmem>>) attributes {dimension_semantics = [#tpu.dimension_semantics<parallel>], iteration_bounds = array<i64: 1>, scalar_prefetch = 0 : i64, scratch_operands = 0 : i64, tpu.core_type = #tpu.core_type<tc>, window_params = [{transform_indices = @transform_0, window_bounds = array<i64: 8, 896>}, {pipeline_mode = #tpu.pipeline_mode<synchronous>, transform_indices = @transform_1, window_bounds = array<i64: 896, 512>}, {pipeline_mode = #tpu.pipeline_mode<synchronous>, transform_indices = @transform_2, window_bounds = array<i64: 1, 512>}, {pipeline_mode = #tpu.pipeline_mode<synchronous>, transform_indices = @transform_3, window_bounds = array<i64: 512, 128>}, {pipeline_mode = #tpu.pipeline_mode<synchronous>, transform_indices = @transform_4, window_bounds = array<i64: 1, 128>}, {transform_indices = @transform_5, window_bounds = array<i64: 8, 128>}, {transform_indices = @transform_6, window_bounds = array<i64: 8, 512>}]} {
    %c0 = arith.constant 0 : index
    %c0_0 = arith.constant 0 : index
    %0 = vector.load %arg1[%c0, %c0_0] : memref<8x896xf32, #tpu.memory_space<vmem>>, vector<8x896xf32>
    %1 = arith.truncf %0 : vector<8x896xf32> to vector<8x896xbf16>
    %c0_1 = arith.constant 0 : index
    %c0_2 = arith.constant 0 : index
    %2 = vector.load %arg2[%c0_1, %c0_2] : memref<896x512xbf16, #tpu.memory_space<vmem>>, vector<896x512xbf16>
    %cst = arith.constant dense<0.000000e+00> : vector<8x512xf32>
    %3 = tpu.matmul %1, %2, %cst {dimension_numbers = #tpu.dot_dimension_numbers<[1], [0], [0], [1], [0, 0, 1, 1], [], []>} : vector<8x896xbf16>, vector<896x512xbf16>, vector<8x512xf32> -> vector<8x512xf32>
    %c0_3 = arith.constant 0 : index
    %c0_4 = arith.constant 0 : index
    %4 = vector.load %arg3[%c0_3, %c0_4] : memref<1x512xf32, #tpu.memory_space<vmem>>, vector<1x512xf32>
    %5 = vector.broadcast %4 : vector<1x512xf32> to vector<8x512xf32>
    %6 = arith.addf %3, %5 : vector<8x512xf32>
    %cst_5 = arith.constant 0.000000e+00 : f32
    %7 = vector.broadcast %cst_5 : f32 to vector<8x512xf32>
    %8 = arith.maximumf %6, %7 : vector<8x512xf32>
    %c0_6 = arith.constant 0 : index
    %c0_7 = arith.constant 0 : index
    %9 = vector.load %arg7[%c0_6, %c0_7] : memref<8x512xf32, #tpu.memory_space<vmem>>, vector<8x512xf32>
    tpu.vector_store %arg7[%c0_6, %c0_7], %8 {strides = array<i32>} : memref<8x512xf32, #tpu.memory_space<vmem>>, vector<8x512xf32>,
    %10 = arith.truncf %8 : vector<8x512xf32> to vector<8x512xbf16>
    %c0_8 = arith.constant 0 : index
    %c0_9 = arith.constant 0 : index
    %11 = vector.load %arg4[%c0_8, %c0_9] : memref<512x128xbf16, #tpu.memory_space<vmem>>, vector<512x128xbf16>
    %cst_10 = arith.constant dense<0.000000e+00> : vector<8x128xf32>
    %12 = tpu.matmul %10, %11, %cst_10 {dimension_numbers = #tpu.dot_dimension_numbers<[1], [0], [0], [1], [0, 0, 1, 1], [], []>} : vector<8x512xbf16>, vector<512x128xbf16>, vector<8x128xf32> -> vector<8x128xf32>
    %c0_11 = arith.constant 0 : index
    %c0_12 = arith.constant 0 : index
    %13 = vector.load %arg5[%c0_11, %c0_12] : memref<1x128xf32, #tpu.memory_space<vmem>>, vector<1x128xf32>
    %14 = vector.broadcast %13 : vector<1x128xf32> to vector<8x128xf32>
    %15 = arith.addf %12, %14 : vector<8x128xf32>
    %c0_13 = arith.constant 0 : index
    %c0_14 = arith.constant 0 : index
    %16 = vector.load %arg6[%c0_13, %c0_14] : memref<8x128xf32, #tpu.memory_space<vmem>>, vector<8x128xf32>
    tpu.vector_store %arg6[%c0_13, %c0_14], %15 {strides = array<i32>} : memref<8x128xf32, #tpu.memory_space<vmem>>, vector<8x128xf32>,
    return
  }
  func.func @transform_0(%arg0: i32) -> (i32, i32) {
    %c0_i32 = arith.constant 0 : i32
    %c0_i32_0 = arith.constant 0 : i32
    return %arg0, %c0_i32 : i32, i32
  }
  func.func @transform_1(%arg0: i32) -> (i32, i32) {
    %c0_i32 = arith.constant 0 : i32
    %c0_i32_0 = arith.constant 0 : i32
    %c0_i32_1 = arith.constant 0 : i32
    return %c0_i32, %c0_i32_0 : i32, i32
  }
  func.func @transform_2(%arg0: i32) -> (i32, i32) {
    %c0_i32 = arith.constant 0 : i32
    %c0_i32_0 = arith.constant 0 : i32
    %c0_i32_1 = arith.constant 0 : i32
    return %c0_i32, %c0_i32_0 : i32, i32
  }
  func.func @transform_3(%arg0: i32) -> (i32, i32) {
    %c0_i32 = arith.constant 0 : i32
    %c0_i32_0 = arith.constant 0 : i32
    %c0_i32_1 = arith.constant 0 : i32
    return %c0_i32, %c0_i32_0 : i32, i32
  }
  func.func @transform_4(%arg0: i32) -> (i32, i32) {
    %c0_i32 = arith.constant 0 : i32
    %c0_i32_0 = arith.constant 0 : i32
    %c0_i32_1 = arith.constant 0 : i32
    return %c0_i32, %c0_i32_0 : i32, i32
  }
  func.func @transform_5(%arg0: i32) -> (i32, i32) {
    %c0_i32 = arith.constant 0 : i32
    %c0_i32_0 = arith.constant 0 : i32
    return %arg0, %c0_i32 : i32, i32
  }
  func.func @transform_6(%arg0: i32) -> (i32, i32) {
    %c0_i32 = arith.constant 0 : i32
    %c0_i32_0 = arith.constant 0 : i32
    return %arg0, %c0_i32 : i32, i32
  }
}

</mosaic_0001>

<llo_original>
// kernel: tpu_custom_call.1
$region0: #{tpu_custom_call.1}
  #allocation0 [shape = 'u32[]', space=smem, size = 0x4, offset = 0x4, fixed_abs, tag = 'smem constant byte address 0x4 - core index']
  #allocation1 [shape = 'u32[144,128]{1,0:T(1,128)}', space=vmem, size = 0x12000, scoped, tag = 'internal scratch']
  %s0 = inlined_call_operand.hbm [shape: f32[8,896], index: 0, kind: input, shape index: {}]
  %s1 = inlined_call_operand.hbm [shape: bf16[896,512], index: 1, kind: input, shape index: {}]
  %s2 = inlined_call_operand.vmem [shape: f32[1,512], index: 2, kind: input, shape index: {}]
  %s3 = inlined_call_operand.hbm [shape: bf16[512,128], index: 3, kind: input, shape index: {}]
  %s4 = inlined_call_operand.vmem [shape: f32[1,128], index: 4, kind: input, shape index: {}]
  %s5 = inlined_call_operand.hbm [shape: f32[8,128], index: 5, kind: output, shape index: {0}]
  %s6 = inlined_call_operand.hbm [shape: f32[8,512], index: 6, kind: output, shape index: {1}]
  %7 = xla_tuple %s5, %s6
  %s8 = sld [smem:[#allocation0]]
  $region50: #{tpu_custom_call.1} parent=0
    _
  %s10 = ssub.s32 1, %s8
  %s11 = scalar_select 0, %s10, %s8
  $region1: #{tpu_custom_call.1} parent=0
    #allocation2 [shape = 'u8[28672]{0}', space=vmem, size = 0x7000, scoped, tag = 'input window, operand 0, single buffered']
    #allocation3 [shape = 's32[1]{0}', space=sflag, size = 0x4, scoped, tag = 'scoped memory for tpu_custom_call.1']
    #allocation4 [shape = 's32[1]{0}', space=sflag, size = 0x4, scoped, tag = 'scoped memory for tpu_custom_call.1']
    #allocation5 [shape = 'u8[917504]{0}', space=vmem, size = 0xe0000, scoped, tag = 'input window, operand 1, single buffered']
    #allocation6 [shape = 's32[1]{0}', space=sflag, size = 0x4, scoped, tag = 'scoped memory for tpu_custom_call.1']
    #allocation7 [shape = 'u8[131072]{0}', space=vmem, size = 0x20000, scoped, tag = 'input window, operand 3, single buffered']
    #allocation8 [shape = 'u8[4096]{0}', space=vmem, size = 0x1000, scoped, tag = 'output window, operand 0, single buffered']
    #allocation9 [shape = 'u8[16384]{0}', space=vmem, size = 0x4000, scoped, tag = 'output window, operand 1, single buffered']
    #allocation10 [shape = 's32[1]{0}', space=sflag, size = 0x4, scoped, tag = 'scoped memory for tpu_custom_call.1']
    %12 = vsyncpa [#allocation3], 0
    %13 = vsyncpa [#allocation6], 0
    %14 = vsyncpa [#allocation4], 0
    %15 = vsyncpa [#allocation10], 0
    // Predicated region
    $region2: #{tpu_custom_call.1} parent=1 // pred_check
      _
    $region3: #{tpu_custom_call.1} parent=1 // pred_check_branch
      %17 = sbr.rel (0) target = $region5
    $region4: #{tpu_custom_call.1} parent=1 // pred_region
      %s19 = ssub.s32 896, 896
      %20 = vsyncadd [#allocation3], %s19
      %s22 = sshll.u32 [#allocation2], 4
      %s23 = int_to_ptr.vmem [resolvable:$true] %s22
      %25 = dma.hbm_to_vmem [thread:$0]  %s0, 896, %s23, [#allocation3]
    $region5: #{tpu_custom_call.1} parent=1 // pred_fallthru
      _
    // Predicated region
    $region6: #{tpu_custom_call.1} parent=1 // pred_check
      _
    $region7: #{tpu_custom_call.1} parent=1 // pred_check_branch
      %27 = sbr.rel (0) target = $region9
    $region8: #{tpu_custom_call.1} parent=1 // pred_region
      %s29 = ssub.s32 28672, 28672
      %30 = vsyncadd [#allocation6], %s29
      %s31 = sshll.u32 [#allocation5], 4
      %s32 = int_to_ptr.vmem [resolvable:$true] %s31
      %37 = dma.hbm_to_vmem [thread:$0]  %s1, 28672, %s32, [#allocation6], 256, 256, 16
    $region9: #{tpu_custom_call.1} parent=1 // pred_fallthru
      _
    // Predicated region
    $region10: #{tpu_custom_call.1} parent=1 // pred_check
      _
    $region11: #{tpu_custom_call.1} parent=1 // pred_check_branch
      %39 = sbr.rel (0) target = $region13
    $region12: #{tpu_custom_call.1} parent=1 // pred_region
      _
    $region13: #{tpu_custom_call.1} parent=1 // pred_fallthru
      _
    // Predicated region
    $region14: #{tpu_custom_call.1} parent=1 // pred_check
      _
    $region15: #{tpu_custom_call.1} parent=1 // pred_check_branch
      %41 = sbr.rel (0) target = $region17
    $region16: #{tpu_custom_call.1} parent=1 // pred_region
      %s43 = ssub.s32 4096, 4096
      %44 = vsyncadd [#allocation6], %s43
      %s45 = sshll.u32 [#allocation7], 4
      %s46 = int_to_ptr.vmem [resolvable:$true] %s45
      %51 = dma.hbm_to_vmem [thread:$0]  %s3, 4096, %s46, [#allocation6], 64, 64, 4
    $region17: #{tpu_custom_call.1} parent=1 // pred_fallthru
      _
    // Predicated region
    $region18: #{tpu_custom_call.1} parent=1 // pred_check
      _
    $region19: #{tpu_custom_call.1} parent=1 // pred_check_branch
      %53 = sbr.rel (0) target = $region21
    $region20: #{tpu_custom_call.1} parent=1 // pred_region
      _
    $region21: #{tpu_custom_call.1} parent=1 // pred_fallthru
      _
    // Predicated region
    $region22: #{tpu_custom_call.1} parent=1 // pred_check
      _
    $region23: #{tpu_custom_call.1} parent=1 // pred_check_branch
      %55 = sbr.rel (0) target = $region25
    $region24: #{tpu_custom_call.1} parent=1 // pred_region
      %56 = dma.done [#allocation3], 896
    $region25: #{tpu_custom_call.1} parent=1 // pred_fallthru
      _
    // Predicated region
    $region26: #{tpu_custom_call.1} parent=1 // pred_check
      _
    $region27: #{tpu_custom_call.1} parent=1 // pred_check_branch
      %58 = sbr.rel (0) target = $region29
    $region28: #{tpu_custom_call.1} parent=1 // pred_region
      %59 = dma.done [#allocation6], 28672
    $region29: #{tpu_custom_call.1} parent=1 // pred_fallthru
      _
    // Predicated region
    $region30: #{tpu_custom_call.1} parent=1 // pred_check
      _
    $region31: #{tpu_custom_call.1} parent=1 // pred_check_branch
      %61 = sbr.rel (0) target = $region33
    $region32: #{tpu_custom_call.1} parent=1 // pred_region
      %62 = dma.done [#allocation6], 4096
    $region33: #{tpu_custom_call.1} parent=1 // pred_fallthru
      _
    %v64 = vld [vmem:[#allocation2] sm:$0xff]
    %v65 = vld [vmem:[#allocation2 + $0x8] sm:$0xff]
    %v66 = vld [vmem:[#allocation2 + $0x10] sm:$0xff]
    %v67 = vld [vmem:[#allocation2 + $0x18] sm:$0xff]
    %v68 = vld [vmem:[#allocation2 + $0x20] sm:$0xff]
    %v69 = vld [vmem:[#allocation2 + $0x28] sm:$0xff]
    %v70 = vld [vmem:[#allocation2 + $0x30] sm:$0xff]
    %v71 = vpack.c.bf16 %v64, %v64
    %v72 = vpack.c.bf16 %v65, %v65
    %v73 = vpack.c.bf16 %v66, %v66
    %v74 = vpack.c.bf16 %v67, %v67
    %v75 = vpack.c.bf16 %v68, %v68
    %v76 = vpack.c.bf16 %v69, %v69
    %v77 = vpack.c.bf16 %v70, %v70
    %v78 = vld [vmem:[#allocation5] sm:$0xff]
    %v79 = vld [vmem:[#allocation5 + $0x8] sm:$0xff]
    %v80 = vld [vmem:[#allocation5 + $0x10] sm:$0xff]
    %v81 = vld [vmem:[#allocation5 + $0x18] sm:$0xff]
    %v82 = vld [vmem:[#allocation5 + $0x20] sm:$0xff]
    %v83 = vld [vmem:[#allocation5 + $0x28] sm:$0xff]
    %v84 = vld [vmem:[#allocation5 + $0x30] sm:$0xff]
    %v85 = vld [vmem:[#allocation5 + $0x38] sm:$0xff]
    %v86 = vld [vmem:[#allocation5 + $0x40] sm:$0xff]
    %v87 = vld [vmem:[#allocation5 + $0x48] sm:$0xff]
    %v88 = vld [vmem:[#allocation5 + $0x50] sm:$0xff]
    %v89 = vld [vmem:[#allocation5 + $0x58] sm:$0xff]
    %v90 = vld [vmem:[#allocation5 + $0x60] sm:$0xff]
    %v91 = vld [vmem:[#allocation5 + $0x68] sm:$0xff]
    %v92 = vld [vmem:[#allocation5 + $0x70] sm:$0xff]
    %v93 = vld [vmem:[#allocation5 + $0x78] sm:$0xff]
    %v94 = vld [vmem:[#allocation5 + $0x80] sm:$0xff]
    %v95 = vld [vmem:[#allocation5 + $0x88] sm:$0xff]
    %v96 = vld [vmem:[#allocation5 + $0x90] sm:$0xff]
    %v97 = vld [vmem:[#allocation5 + $0x98] sm:$0xff]
    %v98 = vld [vmem:[#allocation5 + $0xa0] sm:$0xff]
    %v99 = vld [vmem:[#allocation5 + $0xa8] sm:$0xff]
    %v100 = vld [vmem:[#allocation5 + $0xb0] sm:$0xff]
    %v101 = vld [vmem:[#allocation5 + $0xb8] sm:$0xff]
    %v102 = vld [vmem:[#allocation5 + $0xc0] sm:$0xff]
    %v103 = vld [vmem:[#allocation5 + $0xc8] sm:$0xff]
    %v104 = vld [vmem:[#allocation5 + $0xd0] sm:$0xff]
    %v105 = vld [vmem:[#allocation5 + $0xd8] sm:$0xff]
    %v106 = vld [vmem:[#allocation5 + $0xe0] sm:$0xff]
    %v107 = vld [vmem:[#allocation5 + $0xe8] sm:$0xff]
    %v108 = vld [vmem:[#allocation5 + $0xf0] sm:$0xff]
    %v109 = vld [vmem:[#allocation5 + $0xf8] sm:$0xff]
    %v110 = vld [vmem:[#allocation5 + $0x100] sm:$0xff]
    %v111 = vld [vmem:[#allocation5 + $0x108] sm:$0xff]
    %v112 = vld [vmem:[#allocation5 + $0x110] sm:$0xff]
    %v113 = vld [vmem:[#allocation5 + $0x118] sm:$0xff]
    %v114 = vld [vmem:[#allocation5 + $0x120] sm:$0xff]
    %v115 = vld [vmem:[#allocation5 + $0x128] sm:$0xff]
    %v116 = vld [vmem:[#allocation5 + $0x130] sm:$0xff]
    %v117 = vld [vmem:[#allocation5 + $0x138] sm:$0xff]
    %v118 = vld [vmem:[#allocation5 + $0x140] sm:$0xff]
    %v119 = vld [vmem:[#allocation5 + $0x148] sm:$0xff]
    %v120 = vld [vmem:[#allocation5 + $0x150] sm:$0xff]
    %v121 = vld [vmem:[#allocation5 + $0x158] sm:$0xff]
    %v122 = vld [vmem:[#allocation5 + $0x160] sm:$0xff]
    %v123 = vld [vmem:[#allocation5 + $0x168] sm:$0xff]
    %v124 = vld [vmem:[#allocation5 + $0x170] sm:$0xff]
    %v125 = vld [vmem:[#allocation5 + $0x178] sm:$0xff]
    %v126 = vld [vmem:[#allocation5 + $0x180] sm:$0xff]
    %v127 = vld [vmem:[#allocation5 + $0x188] sm:$0xff]
    %v128 = vld [vmem:[#allocation5 + $0x190] sm:$0xff]
    %v129 = vld [vmem:[#allocation5 + $0x198] sm:$0xff]
    %v130 = vld [vmem:[#allocation5 + $0x1a0] sm:$0xff]
    %v131 = vld [vmem:[#allocation5 + $0x1a8] sm:$0xff]
    %v132 = vld [vmem:[#allocation5 + $0x1b0] sm:$0xff]
    %v133 = vld [vmem:[#allocation5 + $0x1b8] sm:$0xff]
    %v134 = vld [vmem:[#allocation5 + $0x1c0] sm:$0xff]
    %v135 = vld [vmem:[#allocation5 + $0x1c8] sm:$0xff]
    %v136 = vld [vmem:[#allocation5 + $0x1d0] sm:$0xff]
    %v137 = vld [vmem:[#allocation5 + $0x1d8] sm:$0xff]
    %v138 = vld [vmem:[#allocation5 + $0x1e0] sm:$0xff]
    %v139 = vld [vmem:[#allocation5 + $0x1e8] sm:$0xff]
    %v140 = vld [vmem:[#allocation5 + $0x1f0] sm:$0xff]
    %v141 = vld [vmem:[#allocation5 + $0x1f8] sm:$0xff]
    %v142 = vld [vmem:[#allocation5 + $0x200] sm:$0xff]
    %v143 = vld [vmem:[#allocation5 + $0x208] sm:$0xff]
    %v144 = vld [vmem:[#allocation5 + $0x210] sm:$0xff]
    %v145 = vld [vmem:[#allocation5 + $0x218] sm:$0xff]
    %v146 = vld [vmem:[#allocation5 + $0x220] sm:$0xff]
    %v147 = vld [vmem:[#allocation5 + $0x228] sm:$0xff]
    %v148 = vld [vmem:[#allocation5 + $0x230] sm:$0xff]
    %v149 = vld [vmem:[#allocation5 + $0x238] sm:$0xff]
    %v150 = vld [vmem:[#allocation5 + $0x240] sm:$0xff]
    %v151 = vld [vmem:[#allocation5 + $0x248] sm:$0xff]
    %v152 = vld [vmem:[#allocation5 + $0x250] sm:$0xff]
    %v153 = vld [vmem:[#allocation5 + $0x258] sm:$0xff]
    %v154 = vld [vmem:[#allocation5 + $0x260] sm:$0xff]
    %v155 = vld [vmem:[#allocation5 + $0x268] sm:$0xff]
    %v156 = vld [vmem:[#allocation5 + $0x270] sm:$0xff]
    %v157 = vld [vmem:[#allocation5 + $0x278] sm:$0xff]
    %v158 = vld [vmem:[#allocation5 + $0x280] sm:$0xff]
    %v159 = vld [vmem:[#allocation5 + $0x288] sm:$0xff]
    %v160 = vld [vmem:[#allocation5 + $0x290] sm:$0xff]
    %v161 = vld [vmem:[#allocation5 + $0x298] sm:$0xff]
    %v162 = vld [vmem:[#allocation5 + $0x2a0] sm:$0xff]
    %v163 = vld [vmem:[#allocation5 + $0x2a8] sm:$0xff]
    %v164 = vld [vmem:[#allocation5 + $0x2b0] sm:$0xff]
    %v165 = vld [vmem:[#allocation5 + $0x2b8] sm:$0xff]
    %v166 = vld [vmem:[#allocation5 + $0x2c0] sm:$0xff]
    %v167 = vld [vmem:[#allocation5 + $0x2c8] sm:$0xff]
    %v168 = vld [vmem:[#allocation5 + $0x2d0] sm:$0xff]
    %v169 = vld [vmem:[#allocation5 + $0x2d8] sm:$0xff]
    %v170 = vld [vmem:[#allocation5 + $0x2e0] sm:$0xff]
    %v171 = vld [vmem:[#allocation5 + $0x2e8] sm:$0xff]
    %v172 = vld [vmem:[#allocation5 + $0x2f0] sm:$0xff]
    %v173 = vld [vmem:[#allocation5 + $0x2f8] sm:$0xff]
    %v174 = vld [vmem:[#allocation5 + $0x300] sm:$0xff]
    %v175 = vld [vmem:[#allocation5 + $0x308] sm:$0xff]
    %v176 = vld [vmem:[#allocation5 + $0x310] sm:$0xff]
    %v177 = vld [vmem:[#allocation5 + $0x318] sm:$0xff]
    %v178 = vld [vmem:[#allocation5 + $0x320] sm:$0xff]
    %v179 = vld [vmem:[#allocation5 + $0x328] sm:$0xff]
    %v180 = vld [vmem:[#allocation5 + $0x330] sm:$0xff]
    %v181 = vld [vmem:[#allocation5 + $0x338] sm:$0xff]
    %v182 = vld [vmem:[#allocation5 + $0x340] sm:$0xff]
    %v183 = vld [vmem:[#allocation5 + $0x348] sm:$0xff]
    %v184 = vld [vmem:[#allocation5 + $0x350] sm:$0xff]
    %v185 = vld [vmem:[#allocation5 + $0x358] sm:$0xff]
    %v186 = vld [vmem:[#allocation5 + $0x360] sm:$0xff]
    %v187 = vld [vmem:[#allocation5 + $0x368] sm:$0xff]
    %v188 = vld [vmem:[#allocation5 + $0x370] sm:$0xff]
    %v189 = vld [vmem:[#allocation5 + $0x378] sm:$0xff]
    %v190 = vld [vmem:[#allocation5 + $0x380] sm:$0xff]
    %v191 = vld [vmem:[#allocation5 + $0x388] sm:$0xff]
    %v192 = vld [vmem:[#allocation5 + $0x390] sm:$0xff]
    %v193 = vld [vmem:[#allocation5 + $0x398] sm:$0xff]
    %v194 = vld [vmem:[#allocation5 + $0x3a0] sm:$0xff]
    %v195 = vld [vmem:[#allocation5 + $0x3a8] sm:$0xff]
    %v196 = vld [vmem:[#allocation5 + $0x3b0] sm:$0xff]
    %v197 = vld [vmem:[#allocation5 + $0x3b8] sm:$0xff]
    %v198 = vld [vmem:[#allocation5 + $0x3c0] sm:$0xff]
    %v199 = vld [vmem:[#allocation5 + $0x3c8] sm:$0xff]
    %v200 = vld [vmem:[#allocation5 + $0x3d0] sm:$0xff]
    %v201 = vld [vmem:[#allocation5 + $0x3d8] sm:$0xff]
    %v202 = vld [vmem:[#allocation5 + $0x3e0] sm:$0xff]
    %v203 = vld [vmem:[#allocation5 + $0x3e8] sm:$0xff]
    %v204 = vld [vmem:[#allocation5 + $0x3f0] sm:$0xff]
    %v205 = vld [vmem:[#allocation5 + $0x3f8] sm:$0xff]
    %v206 = vld [vmem:[#allocation5 + $0x400] sm:$0xff]
    %v207 = vld [vmem:[#allocation5 + $0x408] sm:$0xff]
    %v208 = vld [vmem:[#allocation5 + $0x410] sm:$0xff]
    %v209 = vld [vmem:[#allocation5 + $0x418] sm:$0xff]
    %v210 = vld [vmem:[#allocation5 + $0x420] sm:$0xff]
    %v211 = vld [vmem:[#allocation5 + $0x428] sm:$0xff]
    %v212 = vld [vmem:[#allocation5 + $0x430] sm:$0xff]
    %v213 = vld [vmem:[#allocation5 + $0x438] sm:$0xff]
    %v214 = vld [vmem:[#allocation5 + $0x440] sm:$0xff]
    %v215 = vld [vmem:[#allocation5 + $0x448] sm:$0xff]
    %v216 = vld [vmem:[#allocation5 + $0x450] sm:$0xff]
    %v217 = vld [vmem:[#allocation5 + $0x458] sm:$0xff]
    %v218 = vld [vmem:[#allocation5 + $0x460] sm:$0xff]
    %v219 = vld [vmem:[#allocation5 + $0x468] sm:$0xff]
    %v220 = vld [vmem:[#allocation5 + $0x470] sm:$0xff]
    %v221 = vld [vmem:[#allocation5 + $0x478] sm:$0xff]
    %v222 = vld [vmem:[#allocation5 + $0x480] sm:$0xff]
    %v223 = vld [vmem:[#allocation5 + $0x488] sm:$0xff]
    %v224 = vld [vmem:[#allocation5 + $0x490] sm:$0xff]
    %v225 = vld [vmem:[#allocation5 + $0x498] sm:$0xff]
    %v226 = vld [vmem:[#allocation5 + $0x4a0] sm:$0xff]
    %v227 = vld [vmem:[#allocation5 + $0x4a8] sm:$0xff]
    %v228 = vld [vmem:[#allocation5 + $0x4b0] sm:$0xff]
    %v229 = vld [vmem:[#allocation5 + $0x4b8] sm:$0xff]
    %v230 = vld [vmem:[#allocation5 + $0x4c0] sm:$0xff]
    %v231 = vld [vmem:[#allocation5 + $0x4c8] sm:$0xff]
    %v232 = vld [vmem:[#allocation5 + $0x4d0] sm:$0xff]
    %v233 = vld [vmem:[#allocation5 + $0x4d8] sm:$0xff]
    %v234 = vld [vmem:[#allocation5 + $0x4e0] sm:$0xff]
    %v235 = vld [vmem:[#allocation5 + $0x4e8] sm:$0xff]
    %v236 = vld [vmem:[#allocation5 + $0x4f0] sm:$0xff]
    %v237 = vld [vmem:[#allocation5 + $0x4f8] sm:$0xff]
    %v238 = vld [vmem:[#allocation5 + $0x500] sm:$0xff]
    %v239 = vld [vmem:[#allocation5 + $0x508] sm:$0xff]
    %v240 = vld [vmem:[#allocation5 + $0x510] sm:$0xff]
    %v241 = vld [vmem:[#allocation5 + $0x518] sm:$0xff]
    %v242 = vld [vmem:[#allocation5 + $0x520] sm:$0xff]
    %v243 = vld [vmem:[#allocation5 + $0x528] sm:$0xff]
    %v244 = vld [vmem:[#allocation5 + $0x530] sm:$0xff]
    %v245 = vld [vmem:[#allocation5 + $0x538] sm:$0xff]
    %v246 = vld [vmem:[#allocation5 + $0x540] sm:$0xff]
    %v247 = vld [vmem:[#allocation5 + $0x548] sm:$0xff]
    %v248 = vld [vmem:[#allocation5 + $0x550] sm:$0xff]
    %v249 = vld [vmem:[#allocation5 + $0x558] sm:$0xff]
    %v250 = vld [vmem:[#allocation5 + $0x560] sm:$0xff]
    %v251 = vld [vmem:[#allocation5 + $0x568] sm:$0xff]
    %v252 = vld [vmem:[#allocation5 + $0x570] sm:$0xff]
    %v253 = vld [vmem:[#allocation5 + $0x578] sm:$0xff]
    %v254 = vld [vmem:[#allocation5 + $0x580] sm:$0xff]
    %v255 = vld [vmem:[#allocation5 + $0x588] sm:$0xff]
    %v256 = vld [vmem:[#allocation5 + $0x590] sm:$0xff]
    %v257 = vld [vmem:[#allocation5 + $0x598] sm:$0xff]
    %v258 = vld [vmem:[#allocation5 + $0x5a0] sm:$0xff]
    %v259 = vld [vmem:[#allocation5 + $0x5a8] sm:$0xff]
    %v260 = vld [vmem:[#allocation5 + $0x5b0] sm:$0xff]
    %v261 = vld [vmem:[#allocation5 + $0x5b8] sm:$0xff]
    %v262 = vld [vmem:[#allocation5 + $0x5c0] sm:$0xff]
    %v263 = vld [vmem:[#allocation5 + $0x5c8] sm:$0xff]
    %v264 = vld [vmem:[#allocation5 + $0x5d0] sm:$0xff]
    %v265 = vld [vmem:[#allocation5 + $0x5d8] sm:$0xff]
    %v266 = vld [vmem:[#allocation5 + $0x5e0] sm:$0xff]
    %v267 = vld [vmem:[#allocation5 + $0x5e8] sm:$0xff]
    %v268 = vld [vmem:[#allocation5 + $0x5f0] sm:$0xff]
    %v269 = vld [vmem:[#allocation5 + $0x5f8] sm:$0xff]
    %v270 = vld [vmem:[#allocation5 + $0x600] sm:$0xff]
    %v271 = vld [vmem:[#allocation5 + $0x608] sm:$0xff]
    %v272 = vld [vmem:[#allocation5 + $0x610] sm:$0xff]
    %v273 = vld [vmem:[#allocation5 + $0x618] sm:$0xff]
    %v274 = vld [vmem:[#allocation5 + $0x620] sm:$0xff]
    %v275 = vld [vmem:[#allocation5 + $0x628] sm:$0xff]
    %v276 = vld [vmem:[#allocation5 + $0x630] sm:$0xff]
    %v277 = vld [vmem:[#allocation5 + $0x638] sm:$0xff]
    %v278 = vld [vmem:[#allocation5 + $0x640] sm:$0xff]
    %v279 = vld [vmem:[#allocation5 + $0x648] sm:$0xff]
    %v280 = vld [vmem:[#allocation5 + $0x650] sm:$0xff]
    %v281 = vld [vmem:[#allocation5 + $0x658] sm:$0xff]
    %v282 = vld [vmem:[#allocation5 + $0x660] sm:$0xff]
    %v283 = vld [vmem:[#allocation5 + $0x668] sm:$0xff]
    %v284 = vld [vmem:[#allocation5 + $0x670] sm:$0xff]
    %v285 = vld [vmem:[#allocation5 + $0x678] sm:$0xff]
    %v286 = vld [vmem:[#allocation5 + $0x680] sm:$0xff]
    %v287 = vld [vmem:[#allocation5 + $0x688] sm:$0xff]
    %v288 = vld [vmem:[#allocation5 + $0x690] sm:$0xff]
    %v289 = vld [vmem:[#allocation5 + $0x698] sm:$0xff]
    %v290 = vld [vmem:[#allocation5 + $0x6a0] sm:$0xff]
    %v291 = vld [vmem:[#allocation5 + $0x6a8] sm:$0xff]
    %v292 = vld [vmem:[#allocation5 + $0x6b0] sm:$0xff]
    %v293 = vld [vmem:[#allocation5 + $0x6b8] sm:$0xff]
    %v294 = vld [vmem:[#allocation5 + $0x6c0] sm:$0xff]
    %v295 = vld [vmem:[#allocation5 + $0x6c8] sm:$0xff]
    %v296 = vld [vmem:[#allocation5 + $0x6d0] sm:$0xff]
    %v297 = vld [vmem:[#allocation5 + $0x6d8] sm:$0xff]
    %v298 = vld [vmem:[#allocation5 + $0x6e0] sm:$0xff]
    %v299 = vld [vmem:[#allocation5 + $0x6e8] sm:$0xff]
    %v300 = vld [vmem:[#allocation5 + $0x6f0] sm:$0xff]
    %v301 = vld [vmem:[#allocation5 + $0x6f8] sm:$0xff]
    %v302 = vld [vmem:[%s2] sm:$0xf]
    %v304 = vlaneseq
    %v305 = vshrl.u32 %v304, 7
    %v306 = vsub.s32 0, %v305
    %v307 = vrot.slane %v302, %v306
    %v308 = vlaneseq
    %v309 = vshrl.u32 %v308, 7
    %v310 = vsub.s32 1, %v309
    %v311 = vrot.slane %v302, %v310
    %v312 = vlaneseq
    %v313 = vshrl.u32 %v312, 7
    %v314 = vsub.s32 2, %v313
    %v315 = vrot.slane %v302, %v314
    %v316 = vlaneseq
    %v317 = vshrl.u32 %v316, 7
    %v318 = vsub.s32 3, %v317
    %v319 = vrot.slane %v302, %v318
    %v548 = vunpack.c.l.b16 %v78
    %v549 = vunpack.c.h.b16 %v78
    %v550 = vunpack.c.l.b16 %v79
    %v551 = vunpack.c.h.b16 %v79
    %v552 = vunpack.c.l.b16 %v80
    %v553 = vunpack.c.h.b16 %v80
    %v554 = vunpack.c.l.b16 %v81
    %v555 = vunpack.c.h.b16 %v81
    %v556 = vunpack.c.l.b16 %v82
    %v557 = vunpack.c.h.b16 %v82
    %v558 = vunpack.c.l.b16 %v83
    %v559 = vunpack.c.h.b16 %v83
    %v560 = vunpack.c.l.b16 %v84
    %v561 = vunpack.c.h.b16 %v84
    %v562 = vunpack.c.l.b16 %v85
    %v563 = vunpack.c.h.b16 %v85
    %v564 = vunpack.c.l.b16 %v86
    %v565 = vunpack.c.h.b16 %v86
    %v566 = vunpack.c.l.b16 %v87
    %v567 = vunpack.c.h.b16 %v87
    %v568 = vunpack.c.l.b16 %v88
    %v569 = vunpack.c.h.b16 %v88
    %v570 = vunpack.c.l.b16 %v89
    %v571 = vunpack.c.h.b16 %v89
    %v572 = vunpack.c.l.b16 %v90
    %v573 = vunpack.c.h.b16 %v90
    %v574 = vunpack.c.l.b16 %v91
    %v575 = vunpack.c.h.b16 %v91
    %v576 = vunpack.c.l.b16 %v92
    %v577 = vunpack.c.h.b16 %v92
    %v578 = vunpack.c.l.b16 %v93
    %v579 = vunpack.c.h.b16 %v93
    %v580 = vunpack.c.l.b16 %v94
    %v581 = vunpack.c.h.b16 %v94
    %v582 = vunpack.c.l.b16 %v95
    %v583 = vunpack.c.h.b16 %v95
    %v584 = vunpack.c.l.b16 %v96
    %v585 = vunpack.c.h.b16 %v96
    %v586 = vunpack.c.l.b16 %v97
    %v587 = vunpack.c.h.b16 %v97
    %v588 = vunpack.c.l.b16 %v98
    %v589 = vunpack.c.h.b16 %v98
    %v590 = vunpack.c.l.b16 %v99
    %v591 = vunpack.c.h.b16 %v99
    %v592 = vunpack.c.l.b16 %v100
    %v593 = vunpack.c.h.b16 %v100
    %v594 = vunpack.c.l.b16 %v101
    %v595 = vunpack.c.h.b16 %v101
    %v596 = vunpack.c.l.b16 %v102
    %v597 = vunpack.c.h.b16 %v102
    %v598 = vunpack.c.l.b16 %v103
    %v599 = vunpack.c.h.b16 %v103
    %v600 = vunpack.c.l.b16 %v104
    %v601 = vunpack.c.h.b16 %v104
    %v602 = vunpack.c.l.b16 %v105
    %v603 = vunpack.c.h.b16 %v105
    %v604 = vunpack.c.l.b16 %v106
    %v605 = vunpack.c.h.b16 %v106
    %v606 = vunpack.c.l.b16 %v107
    %v607 = vunpack.c.h.b16 %v107
    %v608 = vunpack.c.l.b16 %v108
    %v609 = vunpack.c.h.b16 %v108
    %v610 = vunpack.c.l.b16 %v109
    %v611 = vunpack.c.h.b16 %v109
    %v612 = vunpack.c.l.b16 %v110
    %v613 = vunpack.c.h.b16 %v110
    %v614 = vunpack.c.l.b16 %v111
    %v615 = vunpack.c.h.b16 %v111
    %v616 = vunpack.c.l.b16 %v112
    %v617 = vunpack.c.h.b16 %v112
    %v618 = vunpack.c.l.b16 %v113
    %v619 = vunpack.c.h.b16 %v113
    %v620 = vunpack.c.l.b16 %v114
    %v621 = vunpack.c.h.b16 %v114
    %v622 = vunpack.c.l.b16 %v115
    %v623 = vunpack.c.h.b16 %v115
    %v624 = vunpack.c.l.b16 %v116
    %v625 = vunpack.c.h.b16 %v116
    %v626 = vunpack.c.l.b16 %v117
    %v627 = vunpack.c.h.b16 %v117
    %v628 = vunpack.c.l.b16 %v118
    %v629 = vunpack.c.h.b16 %v118
    %v630 = vunpack.c.l.b16 %v119
    %v631 = vunpack.c.h.b16 %v119
    %v632 = vunpack.c.l.b16 %v120
    %v633 = vunpack.c.h.b16 %v120
    %v634 = vunpack.c.l.b16 %v121
    %v635 = vunpack.c.h.b16 %v121
    %v636 = vunpack.c.l.b16 %v122
    %v637 = vunpack.c.h.b16 %v122
    %v638 = vunpack.c.l.b16 %v123
    %v639 = vunpack.c.h.b16 %v123
    %v640 = vunpack.c.l.b16 %v124
    %v641 = vunpack.c.h.b16 %v124
    %v642 = vunpack.c.l.b16 %v125
    %v643 = vunpack.c.h.b16 %v125
    %v644 = vunpack.c.l.b16 %v126
    %v645 = vunpack.c.h.b16 %v126
    %v646 = vunpack.c.l.b16 %v127
    %v647 = vunpack.c.h.b16 %v127
    %v648 = vunpack.c.l.b16 %v128
    %v649 = vunpack.c.h.b16 %v128
    %v650 = vunpack.c.l.b16 %v129
    %v651 = vunpack.c.h.b16 %v129
    %v652 = vunpack.c.l.b16 %v130
    %v653 = vunpack.c.h.b16 %v130
    %v654 = vunpack.c.l.b16 %v131
    %v655 = vunpack.c.h.b16 %v131
    %v656 = vunpack.c.l.b16 %v132
    %v657 = vunpack.c.h.b16 %v132
    %v658 = vunpack.c.l.b16 %v133
    %v659 = vunpack.c.h.b16 %v133
    %v660 = vunpack.c.l.b16 %v134
    %v661 = vunpack.c.h.b16 %v134
    %v662 = vunpack.c.l.b16 %v135
    %v663 = vunpack.c.h.b16 %v135
    %v664 = vunpack.c.l.b16 %v136
    %v665 = vunpack.c.h.b16 %v136
    %v666 = vunpack.c.l.b16 %v137
    %v667 = vunpack.c.h.b16 %v137
    %v668 = vunpack.c.l.b16 %v138
    %v669 = vunpack.c.h.b16 %v138
    %v670 = vunpack.c.l.b16 %v139
    %v671 = vunpack.c.h.b16 %v139
    %v672 = vunpack.c.l.b16 %v140
    %v673 = vunpack.c.h.b16 %v140
    %v674 = vunpack.c.l.b16 %v141
    %v675 = vunpack.c.h.b16 %v141
    %v676 = vunpack.c.l.b16 %v142
    %v677 = vunpack.c.h.b16 %v142
    %v678 = vunpack.c.l.b16 %v143
    %v679 = vunpack.c.h.b16 %v143
    %v680 = vunpack.c.l.b16 %v144
    %v681 = vunpack.c.h.b16 %v144
    %v682 = vunpack.c.l.b16 %v145
    %v683 = vunpack.c.h.b16 %v145
    %v684 = vunpack.c.l.b16 %v146
    %v685 = vunpack.c.h.b16 %v146
    %v686 = vunpack.c.l.b16 %v147
    %v687 = vunpack.c.h.b16 %v147
    %v688 = vunpack.c.l.b16 %v148
    %v689 = vunpack.c.h.b16 %v148
    %v690 = vunpack.c.l.b16 %v149
    %v691 = vunpack.c.h.b16 %v149
    %v692 = vunpack.c.l.b16 %v150
    %v693 = vunpack.c.h.b16 %v150
    %v694 = vunpack.c.l.b16 %v151
    %v695 = vunpack.c.h.b16 %v151
    %v696 = vunpack.c.l.b16 %v152
    %v697 = vunpack.c.h.b16 %v152
    %v698 = vunpack.c.l.b16 %v153
    %v699 = vunpack.c.h.b16 %v153
    %v700 = vunpack.c.l.b16 %v154
    %v701 = vunpack.c.h.b16 %v154
    %v702 = vunpack.c.l.b16 %v155
    %v703 = vunpack.c.h.b16 %v155
    %v704 = vunpack.c.l.b16 %v156
    %v705 = vunpack.c.h.b16 %v156
    %v706 = vunpack.c.l.b16 %v157
    %v707 = vunpack.c.h.b16 %v157
    %v708 = vunpack.c.l.b16 %v158
    %v709 = vunpack.c.h.b16 %v158
    %v710 = vunpack.c.l.b16 %v159
    %v711 = vunpack.c.h.b16 %v159
    %v712 = vunpack.c.l.b16 %v160
    %v713 = vunpack.c.h.b16 %v160
    %v714 = vunpack.c.l.b16 %v161
    %v715 = vunpack.c.h.b16 %v161
    %v716 = vunpack.c.l.b16 %v162
    %v717 = vunpack.c.h.b16 %v162
    %v718 = vunpack.c.l.b16 %v163
    %v719 = vunpack.c.h.b16 %v163
    %v720 = vunpack.c.l.b16 %v164
    %v721 = vunpack.c.h.b16 %v164
    %v722 = vunpack.c.l.b16 %v165
    %v723 = vunpack.c.h.b16 %v165
    %v724 = vunpack.c.l.b16 %v166
    %v725 = vunpack.c.h.b16 %v166
    %v726 = vunpack.c.l.b16 %v167
    %v727 = vunpack.c.h.b16 %v167
    %v728 = vunpack.c.l.b16 %v168
    %v729 = vunpack.c.h.b16 %v168
    %v730 = vunpack.c.l.b16 %v169
    %v731 = vunpack.c.h.b16 %v169
    %v732 = vunpack.c.l.b16 %v170
    %v733 = vunpack.c.h.b16 %v170
    %v734 = vunpack.c.l.b16 %v171
    %v735 = vunpack.c.h.b16 %v171
    %v736 = vunpack.c.l.b16 %v172
    %v737 = vunpack.c.h.b16 %v172
    %v738 = vunpack.c.l.b16 %v173
    %v739 = vunpack.c.h.b16 %v173
    %v740 = vunpack.c.l.b16 %v174
    %v741 = vunpack.c.h.b16 %v174
    %v742 = vunpack.c.l.b16 %v175
    %v743 = vunpack.c.h.b16 %v175
    %v744 = vunpack.c.l.b16 %v176
    %v745 = vunpack.c.h.b16 %v176
    %v746 = vunpack.c.l.b16 %v177
    %v747 = vunpack.c.h.b16 %v177
    %v748 = vunpack.c.l.b16 %v178
    %v749 = vunpack.c.h.b16 %v178
    %v750 = vunpack.c.l.b16 %v179
    %v751 = vunpack.c.h.b16 %v179
    %v752 = vunpack.c.l.b16 %v180
    %v753 = vunpack.c.h.b16 %v180
    %v754 = vunpack.c.l.b16 %v181
    %v755 = vunpack.c.h.b16 %v181
    %v756 = vunpack.c.l.b16 %v182
    %v757 = vunpack.c.h.b16 %v182
    %v758 = vunpack.c.l.b16 %v183
    %v759 = vunpack.c.h.b16 %v183
    %v760 = vunpack.c.l.b16 %v184
    %v761 = vunpack.c.h.b16 %v184
    %v762 = vunpack.c.l.b16 %v185
    %v763 = vunpack.c.h.b16 %v185
    %v764 = vunpack.c.l.b16 %v186
    %v765 = vunpack.c.h.b16 %v186
    %v766 = vunpack.c.l.b16 %v187
    %v767 = vunpack.c.h.b16 %v187
    %v768 = vunpack.c.l.b16 %v188
    %v769 = vunpack.c.h.b16 %v188
    %v770 = vunpack.c.l.b16 %v189
    %v771 = vunpack.c.h.b16 %v189
    %v772 = vunpack.c.l.b16 %v190
    %v773 = vunpack.c.h.b16 %v190
    %v774 = vunpack.c.l.b16 %v191
    %v775 = vunpack.c.h.b16 %v191
    %v776 = vunpack.c.l.b16 %v192
    %v777 = vunpack.c.h.b16 %v192
    %v778 = vunpack.c.l.b16 %v193
    %v779 = vunpack.c.h.b16 %v193
    %v780 = vunpack.c.l.b16 %v194
    %v781 = vunpack.c.h.b16 %v194
    %v782 = vunpack.c.l.b16 %v195
    %v783 = vunpack.c.h.b16 %v195
    %v784 = vunpack.c.l.b16 %v196
    %v785 = vunpack.c.h.b16 %v196
    %v786 = vunpack.c.l.b16 %v197
    %v787 = vunpack.c.h.b16 %v197
    %v788 = vunpack.c.l.b16 %v198
    %v789 = vunpack.c.h.b16 %v198
    %v790 = vunpack.c.l.b16 %v199
    %v791 = vunpack.c.h.b16 %v199
    %v792 = vunpack.c.l.b16 %v200
    %v793 = vunpack.c.h.b16 %v200
    %v794 = vunpack.c.l.b16 %v201
    %v795 = vunpack.c.h.b16 %v201
    %v796 = vunpack.c.l.b16 %v202
    %v797 = vunpack.c.h.b16 %v202
    %v798 = vunpack.c.l.b16 %v203
    %v799 = vunpack.c.h.b16 %v203
    %v800 = vunpack.c.l.b16 %v204
    %v801 = vunpack.c.h.b16 %v204
    %v802 = vunpack.c.l.b16 %v205
    %v803 = vunpack.c.h.b16 %v205
    %v804 = vunpack.c.l.b16 %v206
    %v805 = vunpack.c.h.b16 %v206
    %v806 = vunpack.c.l.b16 %v207
    %v807 = vunpack.c.h.b16 %v207
    %v808 = vunpack.c.l.b16 %v208
    %v809 = vunpack.c.h.b16 %v208
    %v810 = vunpack.c.l.b16 %v209
    %v811 = vunpack.c.h.b16 %v209
    %v812 = vunpack.c.l.b16 %v210
    %v813 = vunpack.c.h.b16 %v210
    %v814 = vunpack.c.l.b16 %v211
    %v815 = vunpack.c.h.b16 %v211
    %v816 = vunpack.c.l.b16 %v212
    %v817 = vunpack.c.h.b16 %v212
    %v818 = vunpack.c.l.b16 %v213
    %v819 = vunpack.c.h.b16 %v213
    %v820 = vunpack.c.l.b16 %v214
    %v821 = vunpack.c.h.b16 %v214
    %v822 = vunpack.c.l.b16 %v215
    %v823 = vunpack.c.h.b16 %v215
    %v824 = vunpack.c.l.b16 %v216
    %v825 = vunpack.c.h.b16 %v216
    %v826 = vunpack.c.l.b16 %v217
    %v827 = vunpack.c.h.b16 %v217
    %v828 = vunpack.c.l.b16 %v218
    %v829 = vunpack.c.h.b16 %v218
    %v830 = vunpack.c.l.b16 %v219
    %v831 = vunpack.c.h.b16 %v219
    %v832 = vunpack.c.l.b16 %v220
    %v833 = vunpack.c.h.b16 %v220
    %v834 = vunpack.c.l.b16 %v221
    %v835 = vunpack.c.h.b16 %v221
    %v836 = vunpack.c.l.b16 %v222
    %v837 = vunpack.c.h.b16 %v222
    %v838 = vunpack.c.l.b16 %v223
    %v839 = vunpack.c.h.b16 %v223
    %v840 = vunpack.c.l.b16 %v224
    %v841 = vunpack.c.h.b16 %v224
    %v842 = vunpack.c.l.b16 %v225
    %v843 = vunpack.c.h.b16 %v225
    %v844 = vunpack.c.l.b16 %v226
    %v845 = vunpack.c.h.b16 %v226
    %v846 = vunpack.c.l.b16 %v227
    %v847 = vunpack.c.h.b16 %v227
    %v848 = vunpack.c.l.b16 %v228
    %v849 = vunpack.c.h.b16 %v228
    %v850 = vunpack.c.l.b16 %v229
    %v851 = vunpack.c.h.b16 %v229
    %v852 = vunpack.c.l.b16 %v230
    %v853 = vunpack.c.h.b16 %v230
    %v854 = vunpack.c.l.b16 %v231
    %v855 = vunpack.c.h.b16 %v231
    %v856 = vunpack.c.l.b16 %v232
    %v857 = vunpack.c.h.b16 %v232
    %v858 = vunpack.c.l.b16 %v233
    %v859 = vunpack.c.h.b16 %v233
    %v860 = vunpack.c.l.b16 %v234
    %v861 = vunpack.c.h.b16 %v234
    %v862 = vunpack.c.l.b16 %v235
    %v863 = vunpack.c.h.b16 %v235
    %v864 = vunpack.c.l.b16 %v236
    %v865 = vunpack.c.h.b16 %v236
    %v866 = vunpack.c.l.b16 %v237
    %v867 = vunpack.c.h.b16 %v237
    %v868 = vunpack.c.l.b16 %v238
    %v869 = vunpack.c.h.b16 %v238
    %v870 = vunpack.c.l.b16 %v239
    %v871 = vunpack.c.h.b16 %v239
    %v872 = vunpack.c.l.b16 %v240
    %v873 = vunpack.c.h.b16 %v240
    %v874 = vunpack.c.l.b16 %v241
    %v875 = vunpack.c.h.b16 %v241
    %v876 = vunpack.c.l.b16 %v242
    %v877 = vunpack.c.h.b16 %v242
    %v878 = vunpack.c.l.b16 %v243
    %v879 = vunpack.c.h.b16 %v243
    %v880 = vunpack.c.l.b16 %v244
    %v881 = vunpack.c.h.b16 %v244
    %v882 = vunpack.c.l.b16 %v245
    %v883 = vunpack.c.h.b16 %v245
    %v884 = vunpack.c.l.b16 %v246
    %v885 = vunpack.c.h.b16 %v246
    %v886 = vunpack.c.l.b16 %v247
    %v887 = vunpack.c.h.b16 %v247
    %v888 = vunpack.c.l.b16 %v248
    %v889 = vunpack.c.h.b16 %v248
    %v890 = vunpack.c.l.b16 %v249
    %v891 = vunpack.c.h.b16 %v249
    %v892 = vunpack.c.l.b16 %v250
    %v893 = vunpack.c.h.b16 %v250
    %v894 = vunpack.c.l.b16 %v251
    %v895 = vunpack.c.h.b16 %v251
    %v896 = vunpack.c.l.b16 %v252
    %v897 = vunpack.c.h.b16 %v252
    %v898 = vunpack.c.l.b16 %v253
    %v899 = vunpack.c.h.b16 %v253
    %v900 = vunpack.c.l.b16 %v254
    %v901 = vunpack.c.h.b16 %v254
    %v902 = vunpack.c.l.b16 %v255
    %v903 = vunpack.c.h.b16 %v255
    %v904 = vunpack.c.l.b16 %v256
    %v905 = vunpack.c.h.b16 %v256
    %v906 = vunpack.c.l.b16 %v257
    %v907 = vunpack.c.h.b16 %v257
    %v908 = vunpack.c.l.b16 %v258
    %v909 = vunpack.c.h.b16 %v258
    %v910 = vunpack.c.l.b16 %v259
    %v911 = vunpack.c.h.b16 %v259
    %v912 = vunpack.c.l.b16 %v260
    %v913 = vunpack.c.h.b16 %v260
    %v914 = vunpack.c.l.b16 %v261
    %v915 = vunpack.c.h.b16 %v261
    %v916 = vunpack.c.l.b16 %v262
    %v917 = vunpack.c.h.b16 %v262
    %v918 = vunpack.c.l.b16 %v263
    %v919 = vunpack.c.h.b16 %v263
    %v920 = vunpack.c.l.b16 %v264
    %v921 = vunpack.c.h.b16 %v264
    %v922 = vunpack.c.l.b16 %v265
    %v923 = vunpack.c.h.b16 %v265
    %v924 = vunpack.c.l.b16 %v266
    %v925 = vunpack.c.h.b16 %v266
    %v926 = vunpack.c.l.b16 %v267
    %v927 = vunpack.c.h.b16 %v267
    %v928 = vunpack.c.l.b16 %v268
    %v929 = vunpack.c.h.b16 %v268
    %v930 = vunpack.c.l.b16 %v269
    %v931 = vunpack.c.h.b16 %v269
    %v932 = vunpack.c.l.b16 %v270
    %v933 = vunpack.c.h.b16 %v270
    %v934 = vunpack.c.l.b16 %v271
    %v935 = vunpack.c.h.b16 %v271
    %v936 = vunpack.c.l.b16 %v272
    %v937 = vunpack.c.h.b16 %v272
    %v938 = vunpack.c.l.b16 %v273
    %v939 = vunpack.c.h.b16 %v273
    %v940 = vunpack.c.l.b16 %v274
    %v941 = vunpack.c.h.b16 %v274
    %v942 = vunpack.c.l.b16 %v275
    %v943 = vunpack.c.h.b16 %v275
    %v944 = vunpack.c.l.b16 %v276
    %v945 = vunpack.c.h.b16 %v276
    %v946 = vunpack.c.l.b16 %v277
    %v947 = vunpack.c.h.b16 %v277
    %v948 = vunpack.c.l.b16 %v278
    %v949 = vunpack.c.h.b16 %v278
    %v950 = vunpack.c.l.b16 %v279
    %v951 = vunpack.c.h.b16 %v279
    %v952 = vunpack.c.l.b16 %v280
    %v953 = vunpack.c.h.b16 %v280
    %v954 = vunpack.c.l.b16 %v281
    %v955 = vunpack.c.h.b16 %v281
    %v956 = vunpack.c.l.b16 %v282
    %v957 = vunpack.c.h.b16 %v282
    %v958 = vunpack.c.l.b16 %v283
    %v959 = vunpack.c.h.b16 %v283
    %v960 = vunpack.c.l.b16 %v284
    %v961 = vunpack.c.h.b16 %v284
    %v962 = vunpack.c.l.b16 %v285
    %v963 = vunpack.c.h.b16 %v285
    %v964 = vunpack.c.l.b16 %v286
    %v965 = vunpack.c.h.b16 %v286
    %v966 = vunpack.c.l.b16 %v287
    %v967 = vunpack.c.h.b16 %v287
    %v968 = vunpack.c.l.b16 %v288
    %v969 = vunpack.c.h.b16 %v288
    %v970 = vunpack.c.l.b16 %v289
    %v971 = vunpack.c.h.b16 %v289
    %v972 = vunpack.c.l.b16 %v290
    %v973 = vunpack.c.h.b16 %v290
    %v974 = vunpack.c.l.b16 %v291
    %v975 = vunpack.c.h.b16 %v291
    %v976 = vunpack.c.l.b16 %v292
    %v977 = vunpack.c.h.b16 %v292
    %v978 = vunpack.c.l.b16 %v293
    %v979 = vunpack.c.h.b16 %v293
    %v980 = vunpack.c.l.b16 %v294
    %v981 = vunpack.c.h.b16 %v294
    %v982 = vunpack.c.l.b16 %v295
    %v983 = vunpack.c.h.b16 %v295
    %v984 = vunpack.c.l.b16 %v296
    %v985 = vunpack.c.h.b16 %v296
    %v986 = vunpack.c.l.b16 %v297
    %v987 = vunpack.c.h.b16 %v297
    %v988 = vunpack.c.l.b16 %v298
    %v989 = vunpack.c.h.b16 %v298
    %v990 = vunpack.c.l.b16 %v299
    %v991 = vunpack.c.h.b16 %v299
    %v992 = vunpack.c.l.b16 %v300
    %v993 = vunpack.c.h.b16 %v300
    %v994 = vunpack.c.l.b16 %v301
    %v995 = vunpack.c.h.b16 %v301
    %v996 = vpack.c.b16 %v552, %v548
    %v997 = vpack.c.b16 %v553, %v549
    %v998 = vpack.c.b16 %v554, %v550
    %v999 = vpack.c.b16 %v555, %v551
    %v1000 = vpack.c.b16 %v560, %v556
    %v1001 = vpack.c.b16 %v561, %v557
    %v1002 = vpack.c.b16 %v562, %v558
    %v1003 = vpack.c.b16 %v563, %v559
    %v1004 = vpack.c.b16 %v568, %v564
    %v1005 = vpack.c.b16 %v569, %v565
    %v1006 = vpack.c.b16 %v570, %v566
    %v1007 = vpack.c.b16 %v571, %v567
    %v1008 = vpack.c.b16 %v576, %v572
    %v1009 = vpack.c.b16 %v577, %v573
    %v1010 = vpack.c.b16 %v578, %v574
    %v1011 = vpack.c.b16 %v579, %v575
    %v1012 = vpack.c.b16 %v584, %v580
    %v1013 = vpack.c.b16 %v585, %v581
    %v1014 = vpack.c.b16 %v586, %v582
    %v1015 = vpack.c.b16 %v587, %v583
    %v1016 = vpack.c.b16 %v592, %v588
    %v1017 = vpack.c.b16 %v593, %v589
    %v1018 = vpack.c.b16 %v594, %v590
    %v1019 = vpack.c.b16 %v595, %v591
    %v1020 = vpack.c.b16 %v600, %v596
    %v1021 = vpack.c.b16 %v601, %v597
    %v1022 = vpack.c.b16 %v602, %v598
    %v1023 = vpack.c.b16 %v603, %v599
    %v1024 = vpack.c.b16 %v608, %v604
    %v1025 = vpack.c.b16 %v609, %v605
    %v1026 = vpack.c.b16 %v610, %v606
    %v1027 = vpack.c.b16 %v611, %v607
    %v1028 = vpack.c.b16 %v616, %v612
    %v1029 = vpack.c.b16 %v617, %v613
    %v1030 = vpack.c.b16 %v618, %v614
    %v1031 = vpack.c.b16 %v619, %v615
    %v1032 = vpack.c.b16 %v624, %v620
    %v1033 = vpack.c.b16 %v625, %v621
    %v1034 = vpack.c.b16 %v626, %v622
    %v1035 = vpack.c.b16 %v627, %v623
    %v1036 = vpack.c.b16 %v632, %v628
    %v1037 = vpack.c.b16 %v633, %v629
    %v1038 = vpack.c.b16 %v634, %v630
    %v1039 = vpack.c.b16 %v635, %v631
    %v1040 = vpack.c.b16 %v640, %v636
    %v1041 = vpack.c.b16 %v641, %v637
    %v1042 = vpack.c.b16 %v642, %v638
    %v1043 = vpack.c.b16 %v643, %v639
    %v1044 = vpack.c.b16 %v648, %v644
    %v1045 = vpack.c.b16 %v649, %v645
    %v1046 = vpack.c.b16 %v650, %v646
    %v1047 = vpack.c.b16 %v651, %v647
    %v1048 = vpack.c.b16 %v656, %v652
    %v1049 = vpack.c.b16 %v657, %v653
    %v1050 = vpack.c.b16 %v658, %v654
    %v1051 = vpack.c.b16 %v659, %v655
    %v1052 = vpack.c.b16 %v664, %v660
    %v1053 = vpack.c.b16 %v665, %v661
    %v1054 = vpack.c.b16 %v666, %v662
    %v1055 = vpack.c.b16 %v667, %v663
    %v1056 = vpack.c.b16 %v672, %v668
    %v1057 = vpack.c.b16 %v673, %v669
    %v1058 = vpack.c.b16 %v674, %v670
    %v1059 = vpack.c.b16 %v675, %v671
    %v1060 = vpack.c.b16 %v680, %v676
    %v1061 = vpack.c.b16 %v681, %v677
    %v1062 = vpack.c.b16 %v682, %v678
    %v1063 = vpack.c.b16 %v683, %v679
    %v1064 = vpack.c.b16 %v688, %v684
    %v1065 = vpack.c.b16 %v689, %v685
    %v1066 = vpack.c.b16 %v690, %v686
    %v1067 = vpack.c.b16 %v691, %v687
    %v1068 = vpack.c.b16 %v696, %v692
    %v1069 = vpack.c.b16 %v697, %v693
    %v1070 = vpack.c.b16 %v698, %v694
    %v1071 = vpack.c.b16 %v699, %v695
    %v1072 = vpack.c.b16 %v704, %v700
    %v1073 = vpack.c.b16 %v705, %v701
    %v1074 = vpack.c.b16 %v706, %v702
    %v1075 = vpack.c.b16 %v707, %v703
    %v1076 = vpack.c.b16 %v712, %v708
    %v1077 = vpack.c.b16 %v713, %v709
    %v1078 = vpack.c.b16 %v714, %v710
    %v1079 = vpack.c.b16 %v715, %v711
    %v1080 = vpack.c.b16 %v720, %v716
    %v1081 = vpack.c.b16 %v721, %v717
    %v1082 = vpack.c.b16 %v722, %v718
    %v1083 = vpack.c.b16 %v723, %v719
    %v1084 = vpack.c.b16 %v728, %v724
    %v1085 = vpack.c.b16 %v729, %v725
    %v1086 = vpack.c.b16 %v730, %v726
    %v1087 = vpack.c.b16 %v731, %v727
    %v1088 = vpack.c.b16 %v736, %v732
    %v1089 = vpack.c.b16 %v737, %v733
    %v1090 = vpack.c.b16 %v738, %v734
    %v1091 = vpack.c.b16 %v739, %v735
    %v1092 = vpack.c.b16 %v744, %v740
    %v1093 = vpack.c.b16 %v745, %v741
    %v1094 = vpack.c.b16 %v746, %v742
    %v1095 = vpack.c.b16 %v747, %v743
    %v1096 = vpack.c.b16 %v752, %v748
    %v1097 = vpack.c.b16 %v753, %v749
    %v1098 = vpack.c.b16 %v754, %v750
    %v1099 = vpack.c.b16 %v755, %v751
    %v1100 = vpack.c.b16 %v760, %v756
    %v1101 = vpack.c.b16 %v761, %v757
    %v1102 = vpack.c.b16 %v762, %v758
    %v1103 = vpack.c.b16 %v763, %v759
    %v1104 = vpack.c.b16 %v768, %v764
    %v1105 = vpack.c.b16 %v769, %v765
    %v1106 = vpack.c.b16 %v770, %v766
    %v1107 = vpack.c.b16 %v771, %v767
    %v1108 = vpack.c.b16 %v776, %v772
    %v1109 = vpack.c.b16 %v777, %v773
    %v1110 = vpack.c.b16 %v778, %v774
    %v1111 = vpack.c.b16 %v779, %v775
    %v1112 = vpack.c.b16 %v784, %v780
    %v1113 = vpack.c.b16 %v785, %v781
    %v1114 = vpack.c.b16 %v786, %v782
    %v1115 = vpack.c.b16 %v787, %v783
    %v1116 = vpack.c.b16 %v792, %v788
    %v1117 = vpack.c.b16 %v793, %v789
    %v1118 = vpack.c.b16 %v794, %v790
    %v1119 = vpack.c.b16 %v795, %v791
    %v1120 = vpack.c.b16 %v800, %v796
    %v1121 = vpack.c.b16 %v801, %v797
    %v1122 = vpack.c.b16 %v802, %v798
    %v1123 = vpack.c.b16 %v803, %v799
    %v1124 = vpack.c.b16 %v808, %v804
    %v1125 = vpack.c.b16 %v809, %v805
    %v1126 = vpack.c.b16 %v810, %v806
    %v1127 = vpack.c.b16 %v811, %v807
    %v1128 = vpack.c.b16 %v816, %v812
    %v1129 = vpack.c.b16 %v817, %v813
    %v1130 = vpack.c.b16 %v818, %v814
    %v1131 = vpack.c.b16 %v819, %v815
    %v1132 = vpack.c.b16 %v824, %v820
    %v1133 = vpack.c.b16 %v825, %v821
    %v1134 = vpack.c.b16 %v826, %v822
    %v1135 = vpack.c.b16 %v827, %v823
    %v1136 = vpack.c.b16 %v832, %v828
    %v1137 = vpack.c.b16 %v833, %v829
    %v1138 = vpack.c.b16 %v834, %v830
    %v1139 = vpack.c.b16 %v835, %v831
    %v1140 = vpack.c.b16 %v840, %v836
    %v1141 = vpack.c.b16 %v841, %v837
    %v1142 = vpack.c.b16 %v842, %v838
    %v1143 = vpack.c.b16 %v843, %v839
    %v1144 = vpack.c.b16 %v848, %v844
    %v1145 = vpack.c.b16 %v849, %v845
    %v1146 = vpack.c.b16 %v850, %v846
    %v1147 = vpack.c.b16 %v851, %v847
    %v1148 = vpack.c.b16 %v856, %v852
    %v1149 = vpack.c.b16 %v857, %v853
    %v1150 = vpack.c.b16 %v858, %v854
    %v1151 = vpack.c.b16 %v859, %v855
    %v1152 = vpack.c.b16 %v864, %v860
    %v1153 = vpack.c.b16 %v865, %v861
    %v1154 = vpack.c.b16 %v866, %v862
    %v1155 = vpack.c.b16 %v867, %v863
    %v1156 = vpack.c.b16 %v872, %v868
    %v1157 = vpack.c.b16 %v873, %v869
    %v1158 = vpack.c.b16 %v874, %v870
    %v1159 = vpack.c.b16 %v875, %v871
    %v1160 = vpack.c.b16 %v880, %v876
    %v1161 = vpack.c.b16 %v881, %v877
    %v1162 = vpack.c.b16 %v882, %v878
    %v1163 = vpack.c.b16 %v883, %v879
    %v1164 = vpack.c.b16 %v888, %v884
    %v1165 = vpack.c.b16 %v889, %v885
    %v1166 = vpack.c.b16 %v890, %v886
    %v1167 = vpack.c.b16 %v891, %v887
    %v1168 = vpack.c.b16 %v896, %v892
    %v1169 = vpack.c.b16 %v897, %v893
    %v1170 = vpack.c.b16 %v898, %v894
    %v1171 = vpack.c.b16 %v899, %v895
    %v1172 = vpack.c.b16 %v904, %v900
    %v1173 = vpack.c.b16 %v905, %v901
    %v1174 = vpack.c.b16 %v906, %v902
    %v1175 = vpack.c.b16 %v907, %v903
    %v1176 = vpack.c.b16 %v912, %v908
    %v1177 = vpack.c.b16 %v913, %v909
    %v1178 = vpack.c.b16 %v914, %v910
    %v1179 = vpack.c.b16 %v915, %v911
    %v1180 = vpack.c.b16 %v920, %v916
    %v1181 = vpack.c.b16 %v921, %v917
    %v1182 = vpack.c.b16 %v922, %v918
    %v1183 = vpack.c.b16 %v923, %v919
    %v1184 = vpack.c.b16 %v928, %v924
    %v1185 = vpack.c.b16 %v929, %v925
    %v1186 = vpack.c.b16 %v930, %v926
    %v1187 = vpack.c.b16 %v931, %v927
    %v1188 = vpack.c.b16 %v936, %v932
    %v1189 = vpack.c.b16 %v937, %v933
    %v1190 = vpack.c.b16 %v938, %v934
    %v1191 = vpack.c.b16 %v939, %v935
    %v1192 = vpack.c.b16 %v944, %v940
    %v1193 = vpack.c.b16 %v945, %v941
    %v1194 = vpack.c.b16 %v946, %v942
    %v1195 = vpack.c.b16 %v947, %v943
    %v1196 = vpack.c.b16 %v952, %v948
    %v1197 = vpack.c.b16 %v953, %v949
    %v1198 = vpack.c.b16 %v954, %v950
    %v1199 = vpack.c.b16 %v955, %v951
    %v1200 = vpack.c.b16 %v960, %v956
    %v1201 = vpack.c.b16 %v961, %v957
    %v1202 = vpack.c.b16 %v962, %v958
    %v1203 = vpack.c.b16 %v963, %v959
    %v1204 = vpack.c.b16 %v968, %v964
    %v1205 = vpack.c.b16 %v969, %v965
    %v1206 = vpack.c.b16 %v970, %v966
    %v1207 = vpack.c.b16 %v971, %v967
    %v1208 = vpack.c.b16 %v976, %v972
    %v1209 = vpack.c.b16 %v977, %v973
    %v1210 = vpack.c.b16 %v978, %v974
    %v1211 = vpack.c.b16 %v979, %v975
    %v1212 = vpack.c.b16 %v984, %v980
    %v1213 = vpack.c.b16 %v985, %v981
    %v1214 = vpack.c.b16 %v986, %v982
    %v1215 = vpack.c.b16 %v987, %v983
    %v1216 = vpack.c.b16 %v992, %v988
    %v1217 = vpack.c.b16 %v993, %v989
    %v1218 = vpack.c.b16 %v994, %v990
    %v1219 = vpack.c.b16 %v995, %v991
    %1444 = vmatprep.subr.bf16.mxu0 %v997
    %1445 = vmatpush1.bf16.msra.mxu0 %v996
    %1446 = vmatprep.subr.bf16.mxu0 %v1001
    %1447 = vmatpush1.bf16.msra.mxu0 %v1000
    %1448 = vmatprep.subr.bf16.mxu0 %v1005
    %1449 = vmatpush1.bf16.msra.mxu0 %v1004
    %1450 = vmatprep.subr.bf16.mxu0 %v1009
    %1451 = vmatpush1.bf16.msra.mxu0 %v1008
    %1452 = vmatprep.subr.bf16.mxu0 %v1013
    %1453 = vmatpush1.bf16.msra.mxu0 %v1012
    %1454 = vmatprep.subr.bf16.mxu0 %v1017
    %1455 = vmatpush1.bf16.msra.mxu0 %v1016
    %1456 = vmatprep.subr.bf16.mxu0 %v1021
    %1457 = vmatpush1.bf16.msra.mxu0 %v1020
    %1458 = vmatprep.subr.bf16.mxu0 %v1025
    %1459 = vmatpush1.bf16.msra.mxu0 %v1024
    %1460 = vmatprep.subr.bf16.mxu0 %v1029
    %1461 = vmatpush1.bf16.msra.mxu0 %v1028
    %1462 = vmatprep.subr.bf16.mxu0 %v1033
    %1463 = vmatpush1.bf16.msra.mxu0 %v1032
    %1464 = vmatprep.subr.bf16.mxu0 %v1037
    %1465 = vmatpush1.bf16.msra.mxu0 %v1036
    %1466 = vmatprep.subr.bf16.mxu0 %v1041
    %1467 = vmatpush1.bf16.msra.mxu0 %v1040
    %1468 = vmatprep.subr.bf16.mxu0 %v1045
    %1469 = vmatpush1.bf16.msra.mxu0 %v1044
    %1470 = vmatprep.subr.bf16.mxu0 %v1049
    %1471 = vmatpush1.bf16.msra.mxu0 %v1048
    %1472 = vmatprep.subr.bf16.mxu0 %v1053
    %1473 = vmatpush1.bf16.msra.mxu0 %v1052
    %1474 = vmatprep.subr.bf16.mxu0 %v1057
    %1475 = vmatpush1.bf16.msra.mxu0 %v1056
    %1476 = vmatprep.mubr.bf16.mxu0 %v72
    %1477 = vmatmul.mubr.bf16.gmra.mrb[0].mxu0 %v71
    %v1478 = vpop.f32.mrb[0].mxu0
    %v1479 = vadd.f32 %v307, %v1478
    %v1480 = vpop.f32.mrb[0].mxu0
    %v1481 = vadd.f32 %v311, %v1480
    %v1482 = vpop.f32.mrb[0].mxu0
    %v1483 = vpop.f32.mrb[0].mxu0
    %1484 = vdwg.mxu0
    %1485 = vmatprep.subr.bf16.mxu0 %v1061
    %1486 = vmatpush1.bf16.msra.mxu0 %v1060
    %1487 = vmatprep.subr.bf16.mxu0 %v1065
    %1488 = vmatpush1.bf16.msra.mxu0 %v1064
    %1489 = vmatprep.subr.bf16.mxu0 %v1069
    %1490 = vmatpush1.bf16.msra.mxu0 %v1068
    %1491 = vmatprep.subr.bf16.mxu0 %v1073
    %1492 = vmatpush1.bf16.msra.mxu0 %v1072
    %1493 = vmatprep.subr.bf16.mxu0 %v1077
    %1494 = vmatpush1.bf16.msra.mxu0 %v1076
    %1495 = vmatprep.subr.bf16.mxu0 %v1081
    %1496 = vmatpush1.bf16.msra.mxu0 %v1080
    %1497 = vmatprep.subr.bf16.mxu0 %v1085
    %1498 = vmatpush1.bf16.msra.mxu0 %v1084
    %1499 = vmatprep.subr.bf16.mxu0 %v1089
    %1500 = vmatpush1.bf16.msra.mxu0 %v1088
    %1501 = vmatprep.subr.bf16.mxu0 %v1093
    %1502 = vmatpush1.bf16.msra.mxu0 %v1092
    %1503 = vmatprep.subr.bf16.mxu0 %v1097
    %1504 = vmatpush1.bf16.msra.mxu0 %v1096
    %1505 = vmatprep.subr.bf16.mxu0 %v1101
    %1506 = vmatpush1.bf16.msra.mxu0 %v1100
    %1507 = vmatprep.subr.bf16.mxu0 %v1105
    %1508 = vmatpush1.bf16.msra.mxu0 %v1104
    %1509 = vmatprep.subr.bf16.mxu0 %v1109
    %1510 = vmatpush1.bf16.msra.mxu0 %v1108
    %1511 = vmatprep.subr.bf16.mxu0 %v1113
    %1512 = vmatpush1.bf16.msra.mxu0 %v1112
    %1513 = vmatprep.subr.bf16.mxu0 %v1117
    %1514 = vmatpush1.bf16.msra.mxu0 %v1116
    %1515 = vmatprep.subr.bf16.mxu0 %v1121
    %1516 = vmatpush1.bf16.msra.mxu0 %v1120
    %1517 = vmatprep.mubr.bf16.mxu0 %v74
    %1518 = vmatmul.mubr.bf16.gmra.mrb[0].mxu0 %v73
    %v1519 = vpop.f32.mrb[0].mxu0
    %v1520 = vadd.f32 %v1479, %v1519
    %v1521 = vpop.f32.mrb[0].mxu0
    %v1522 = vadd.f32 %v1481, %v1521
    %v1523 = vpop.f32.mrb[0].mxu0
    %v1524 = vpop.f32.mrb[0].mxu0
    %1525 = vdwg.mxu0
    %1526 = vmatprep.subr.bf16.mxu0 %v1125
    %1527 = vmatpush1.bf16.msra.mxu0 %v1124
    %1528 = vmatprep.subr.bf16.mxu0 %v1129
    %1529 = vmatpush1.bf16.msra.mxu0 %v1128
    %1530 = vmatprep.subr.bf16.mxu0 %v1133
    %1531 = vmatpush1.bf16.msra.mxu0 %v1132
    %1532 = vmatprep.subr.bf16.mxu0 %v1137
    %1533 = vmatpush1.bf16.msra.mxu0 %v1136
    %1534 = vmatprep.subr.bf16.mxu0 %v1141
    %1535 = vmatpush1.bf16.msra.mxu0 %v1140
    %1536 = vmatprep.subr.bf16.mxu0 %v1145
    %1537 = vmatpush1.bf16.msra.mxu0 %v1144
    %1538 = vmatprep.subr.bf16.mxu0 %v1149
    %1539 = vmatpush1.bf16.msra.mxu0 %v1148
    %1540 = vmatprep.subr.bf16.mxu0 %v1153
    %1541 = vmatpush1.bf16.msra.mxu0 %v1152
    %1542 = vmatprep.subr.bf16.mxu0 %v1157
    %1543 = vmatpush1.bf16.msra.mxu0 %v1156
    %1544 = vmatprep.subr.bf16.mxu0 %v1161
    %1545 = vmatpush1.bf16.msra.mxu0 %v1160
    %1546 = vmatprep.subr.bf16.mxu0 %v1165
    %1547 = vmatpush1.bf16.msra.mxu0 %v1164
    %1548 = vmatprep.subr.bf16.mxu0 %v1169
    %1549 = vmatpush1.bf16.msra.mxu0 %v1168
    %1550 = vmatprep.subr.bf16.mxu0 %v1173
    %1551 = vmatpush1.bf16.msra.mxu0 %v1172
    %1552 = vmatprep.subr.bf16.mxu0 %v1177
    %1553 = vmatpush1.bf16.msra.mxu0 %v1176
    %1554 = vmatprep.subr.bf16.mxu0 %v1181
    %1555 = vmatpush1.bf16.msra.mxu0 %v1180
    %1556 = vmatprep.subr.bf16.mxu0 %v1185
    %1557 = vmatpush1.bf16.msra.mxu0 %v1184
    %1558 = vmatprep.mubr.bf16.mxu0 %v76
    %1559 = vmatmul.mubr.bf16.gmra.mrb[0].mxu0 %v75
    %v1560 = vpop.f32.mrb[0].mxu0
    %v1561 = vadd.f32 %v1520, %v1560
    %v1562 = vpop.f32.mrb[0].mxu0
    %v1563 = vadd.f32 %v1522, %v1562
    %v1564 = vpop.f32.mrb[0].mxu0
    %v1565 = vpop.f32.mrb[0].mxu0
    %1566 = vdwg.mxu0
    %1567 = vmatprep.subr.bf16.mxu0 %v1189
    %1568 = vmatpush1.bf16.msra.mxu0 %v1188
    %1569 = vmatprep.subr.bf16.mxu0 %v1193
    %1570 = vmatpush1.bf16.msra.mxu0 %v1192
    %1571 = vmatprep.subr.bf16.mxu0 %v1197
    %1572 = vmatpush1.bf16.msra.mxu0 %v1196
    %1573 = vmatprep.subr.bf16.mxu0 %v1201
    %1574 = vmatpush1.bf16.msra.mxu0 %v1200
    %1575 = vmatprep.subr.bf16.mxu0 %v1205
    %1576 = vmatpush1.bf16.msra.mxu0 %v1204
    %1577 = vmatprep.subr.bf16.mxu0 %v1209
    %1578 = vmatpush1.bf16.msra.mxu0 %v1208
    %1579 = vmatprep.subr.bf16.mxu0 %v1213
    %1580 = vmatpush1.bf16.msra.mxu0 %v1212
    %1581 = vmatprep.subr.bf16.mxu0 %v1217
    %1582 = vmatpush1.bf16.msra.mxu0 %v1216
    %1583 = vmatprep.subr.bf16.mxu0 0
    %1584 = vmatpush1.bf16.msra.mxu0 0
    %1585 = vmatprep.subr.bf16.mxu0 0
    %1586 = vmatpush1.bf16.msra.mxu0 0
    %1587 = vmatprep.subr.bf16.mxu0 0
    %1588 = vmatpush1.bf16.msra.mxu0 0
    %1589 = vmatprep.subr.bf16.mxu0 0
    %1590 = vmatpush1.bf16.msra.mxu0 0
    %1591 = vmatprep.subr.bf16.mxu0 0
    %1592 = vmatpush1.bf16.msra.mxu0 0
    %1593 = vmatprep.subr.bf16.mxu0 0
    %1594 = vmatpush1.bf16.msra.mxu0 0
    %1595 = vmatprep.subr.bf16.mxu0 0
    %1596 = vmatpush1.bf16.msra.mxu0 0
    %1597 = vmatprep.subr.bf16.mxu0 0
    %1598 = vmatpush1.bf16.msra.mxu0 0
    %1599 = vmatprep.mubr.bf16.mxu0 0
    %1600 = vmatmul.mubr.bf16.gmra.mrb[0].mxu0 %v77
    %v1601 = vpop.f32.mrb[0].mxu0
    %v1602 = vadd.f32 %v1561, %v1601
    %v1603 = vpop.f32.mrb[0].mxu0
    %v1604 = vadd.f32 %v1563, %v1603
    %v1605 = vpop.f32.mrb[0].mxu0
    %v1606 = vpop.f32.mrb[0].mxu0
    %1607 = vdwg.mxu0
    %1608 = vmatprep.subr.bf16.mxu0 %v999
    %1609 = vmatpush1.bf16.msra.mxu0 %v998
    %1610 = vmatprep.subr.bf16.mxu0 %v1003
    %1611 = vmatpush1.bf16.msra.mxu0 %v1002
    %1612 = vmatprep.subr.bf16.mxu0 %v1007
    %1613 = vmatpush1.bf16.msra.mxu0 %v1006
    %1614 = vmatprep.subr.bf16.mxu0 %v1011
    %1615 = vmatpush1.bf16.msra.mxu0 %v1010
    %1616 = vmatprep.subr.bf16.mxu0 %v1015
    %1617 = vmatpush1.bf16.msra.mxu0 %v1014
    %1618 = vmatprep.subr.bf16.mxu0 %v1019
    %1619 = vmatpush1.bf16.msra.mxu0 %v1018
    %1620 = vmatprep.subr.bf16.mxu0 %v1023
    %1621 = vmatpush1.bf16.msra.mxu0 %v1022
    %1622 = vmatprep.subr.bf16.mxu0 %v1027
    %1623 = vmatpush1.bf16.msra.mxu0 %v1026
    %1624 = vmatprep.subr.bf16.mxu0 %v1031
    %1625 = vmatpush1.bf16.msra.mxu0 %v1030
    %1626 = vmatprep.subr.bf16.mxu0 %v1035
    %1627 = vmatpush1.bf16.msra.mxu0 %v1034
    %1628 = vmatprep.subr.bf16.mxu0 %v1039
    %1629 = vmatpush1.bf16.msra.mxu0 %v1038
    %1630 = vmatprep.subr.bf16.mxu0 %v1043
    %1631 = vmatpush1.bf16.msra.mxu0 %v1042
    %1632 = vmatprep.subr.bf16.mxu0 %v1047
    %1633 = vmatpush1.bf16.msra.mxu0 %v1046
    %1634 = vmatprep.subr.bf16.mxu0 %v1051
    %1635 = vmatpush1.bf16.msra.mxu0 %v1050
    %1636 = vmatprep.subr.bf16.mxu0 %v1055
    %1637 = vmatpush1.bf16.msra.mxu0 %v1054
    %1638 = vmatprep.subr.bf16.mxu0 %v1059
    %1639 = vmatpush1.bf16.msra.mxu0 %v1058
    %1640 = vmatprep.mubr.bf16.mxu0 %v72
    %1641 = vmatmul.mubr.bf16.gmra.mrb[0].mxu0 %v71
    %v1642 = vpop.f32.mrb[0].mxu0
    %v1643 = vadd.f32 %v315, %v1642
    %v1644 = vpop.f32.mrb[0].mxu0
    %v1645 = vadd.f32 %v319, %v1644
    %v1646 = vpop.f32.mrb[0].mxu0
    %v1647 = vpop.f32.mrb[0].mxu0
    %1648 = vdwg.mxu0
    %1649 = vmatprep.subr.bf16.mxu0 %v1063
    %1650 = vmatpush1.bf16.msra.mxu0 %v1062
    %1651 = vmatprep.subr.bf16.mxu0 %v1067
    %1652 = vmatpush1.bf16.msra.mxu0 %v1066
    %1653 = vmatprep.subr.bf16.mxu0 %v1071
    %1654 = vmatpush1.bf16.msra.mxu0 %v1070
    %1655 = vmatprep.subr.bf16.mxu0 %v1075
    %1656 = vmatpush1.bf16.msra.mxu0 %v1074
    %1657 = vmatprep.subr.bf16.mxu0 %v1079
    %1658 = vmatpush1.bf16.msra.mxu0 %v1078
    %1659 = vmatprep.subr.bf16.mxu0 %v1083
    %1660 = vmatpush1.bf16.msra.mxu0 %v1082
    %1661 = vmatprep.subr.bf16.mxu0 %v1087
    %1662 = vmatpush1.bf16.msra.mxu0 %v1086
    %1663 = vmatprep.subr.bf16.mxu0 %v1091
    %1664 = vmatpush1.bf16.msra.mxu0 %v1090
    %1665 = vmatprep.subr.bf16.mxu0 %v1095
    %1666 = vmatpush1.bf16.msra.mxu0 %v1094
    %1667 = vmatprep.subr.bf16.mxu0 %v1099
    %1668 = vmatpush1.bf16.msra.mxu0 %v1098
    %1669 = vmatprep.subr.bf16.mxu0 %v1103
    %1670 = vmatpush1.bf16.msra.mxu0 %v1102
    %1671 = vmatprep.subr.bf16.mxu0 %v1107
    %1672 = vmatpush1.bf16.msra.mxu0 %v1106
    %1673 = vmatprep.subr.bf16.mxu0 %v1111
    %1674 = vmatpush1.bf16.msra.mxu0 %v1110
    %1675 = vmatprep.subr.bf16.mxu0 %v1115
    %1676 = vmatpush1.bf16.msra.mxu0 %v1114
    %1677 = vmatprep.subr.bf16.mxu0 %v1119
    %1678 = vmatpush1.bf16.msra.mxu0 %v1118
    %1679 = vmatprep.subr.bf16.mxu0 %v1123
    %1680 = vmatpush1.bf16.msra.mxu0 %v1122
    %1681 = vmatprep.mubr.bf16.mxu0 %v74
    %1682 = vmatmul.mubr.bf16.gmra.mrb[0].mxu0 %v73
    %v1683 = vpop.f32.mrb[0].mxu0
    %v1684 = vadd.f32 %v1643, %v1683
    %v1685 = vpop.f32.mrb[0].mxu0
    %v1686 = vadd.f32 %v1645, %v1685
    %v1687 = vpop.f32.mrb[0].mxu0
    %v1688 = vpop.f32.mrb[0].mxu0
    %1689 = vdwg.mxu0
    %1690 = vmatprep.subr.bf16.mxu0 %v1127
    %1691 = vmatpush1.bf16.msra.mxu0 %v1126
    %1692 = vmatprep.subr.bf16.mxu0 %v1131
    %1693 = vmatpush1.bf16.msra.mxu0 %v1130
    %1694 = vmatprep.subr.bf16.mxu0 %v1135
    %1695 = vmatpush1.bf16.msra.mxu0 %v1134
    %1696 = vmatprep.subr.bf16.mxu0 %v1139
    %1697 = vmatpush1.bf16.msra.mxu0 %v1138
    %1698 = vmatprep.subr.bf16.mxu0 %v1143
    %1699 = vmatpush1.bf16.msra.mxu0 %v1142
    %1700 = vmatprep.subr.bf16.mxu0 %v1147
    %1701 = vmatpush1.bf16.msra.mxu0 %v1146
    %1702 = vmatprep.subr.bf16.mxu0 %v1151
    %1703 = vmatpush1.bf16.msra.mxu0 %v1150
    %1704 = vmatprep.subr.bf16.mxu0 %v1155
    %1705 = vmatpush1.bf16.msra.mxu0 %v1154
    %1706 = vmatprep.subr.bf16.mxu0 %v1159
    %1707 = vmatpush1.bf16.msra.mxu0 %v1158
    %1708 = vmatprep.subr.bf16.mxu0 %v1163
    %1709 = vmatpush1.bf16.msra.mxu0 %v1162
    %1710 = vmatprep.subr.bf16.mxu0 %v1167
    %1711 = vmatpush1.bf16.msra.mxu0 %v1166
    %1712 = vmatprep.subr.bf16.mxu0 %v1171
    %1713 = vmatpush1.bf16.msra.mxu0 %v1170
    %1714 = vmatprep.subr.bf16.mxu0 %v1175
    %1715 = vmatpush1.bf16.msra.mxu0 %v1174
    %1716 = vmatprep.subr.bf16.mxu0 %v1179
    %1717 = vmatpush1.bf16.msra.mxu0 %v1178
    %1718 = vmatprep.subr.bf16.mxu0 %v1183
    %1719 = vmatpush1.bf16.msra.mxu0 %v1182
    %1720 = vmatprep.subr.bf16.mxu0 %v1187
    %1721 = vmatpush1.bf16.msra.mxu0 %v1186
    %1722 = vmatprep.mubr.bf16.mxu0 %v76
    %1723 = vmatmul.mubr.bf16.gmra.mrb[0].mxu0 %v75
    %v1724 = vpop.f32.mrb[0].mxu0
    %v1725 = vadd.f32 %v1684, %v1724
    %v1726 = vpop.f32.mrb[0].mxu0
    %v1727 = vadd.f32 %v1686, %v1726
    %v1728 = vpop.f32.mrb[0].mxu0
    %v1729 = vpop.f32.mrb[0].mxu0
    %1730 = vdwg.mxu0
    %1731 = vmatprep.subr.bf16.mxu0 %v1191
    %1732 = vmatpush1.bf16.msra.mxu0 %v1190
    %1733 = vmatprep.subr.bf16.mxu0 %v1195
    %1734 = vmatpush1.bf16.msra.mxu0 %v1194
    %1735 = vmatprep.subr.bf16.mxu0 %v1199
    %1736 = vmatpush1.bf16.msra.mxu0 %v1198
    %1737 = vmatprep.subr.bf16.mxu0 %v1203
    %1738 = vmatpush1.bf16.msra.mxu0 %v1202
    %1739 = vmatprep.subr.bf16.mxu0 %v1207
    %1740 = vmatpush1.bf16.msra.mxu0 %v1206
    %1741 = vmatprep.subr.bf16.mxu0 %v1211
    %1742 = vmatpush1.bf16.msra.mxu0 %v1210
    %1743 = vmatprep.subr.bf16.mxu0 %v1215
    %1744 = vmatpush1.bf16.msra.mxu0 %v1214
    %1745 = vmatprep.subr.bf16.mxu0 %v1219
    %1746 = vmatpush1.bf16.msra.mxu0 %v1218
    %1747 = vmatprep.subr.bf16.mxu0 0
    %1748 = vmatpush1.bf16.msra.mxu0 0
    %1749 = vmatprep.subr.bf16.mxu0 0
    %1750 = vmatpush1.bf16.msra.mxu0 0
    %1751 = vmatprep.subr.bf16.mxu0 0
    %1752 = vmatpush1.bf16.msra.mxu0 0
    %1753 = vmatprep.subr.bf16.mxu0 0
    %1754 = vmatpush1.bf16.msra.mxu0 0
    %1755 = vmatprep.subr.bf16.mxu0 0
    %1756 = vmatpush1.bf16.msra.mxu0 0
    %1757 = vmatprep.subr.bf16.mxu0 0
    %1758 = vmatpush1.bf16.msra.mxu0 0
    %1759 = vmatprep.subr.bf16.mxu0 0
    %1760 = vmatpush1.bf16.msra.mxu0 0
    %1761 = vmatprep.subr.bf16.mxu0 0
    %1762 = vmatpush1.bf16.msra.mxu0 0
    %1763 = vmatprep.mubr.bf16.mxu0 0
    %1764 = vmatmul.mubr.bf16.gmra.mrb[0].mxu0 %v77
    %v1765 = vpop.f32.mrb[0].mxu0
    %v1766 = vadd.f32 %v1725, %v1765
    %v1767 = vpop.f32.mrb[0].mxu0
    %v1768 = vadd.f32 %v1727, %v1767
    %v1769 = vpop.f32.mrb[0].mxu0
    %v1770 = vpop.f32.mrb[0].mxu0
    %1771 = vdwg.mxu0
    %v1772 = vmax.f32 %v1602, 0.0
    %v1773 = vmax.f32 %v1604, 0.0
    %v1774 = vmax.f32 %v1766, 0.0
    %v1775 = vmax.f32 %v1768, 0.0
    %1776 = vst [vmem:[#allocation9] sm:$0xff] %v1772
    %1777 = vst [vmem:[#allocation9 + $0x8] sm:$0xff] %v1773
    %1778 = vst [vmem:[#allocation9 + $0x10] sm:$0xff] %v1774
    %1779 = vst [vmem:[#allocation9 + $0x18] sm:$0xff] %v1775
    %v1780 = vpack.c.bf16 %v1772, %v1772
    %v1781 = vpack.c.bf16 %v1773, %v1773
    %v1782 = vpack.c.bf16 %v1774, %v1774
    %v1783 = vpack.c.bf16 %v1775, %v1775
    %v1784 = vld [vmem:[#allocation7] sm:$0xf]
    %v1785 = vld [vmem:[#allocation7 + $0x4] sm:$0xf]
    %v1786 = vld [vmem:[#allocation7 + $0x8] sm:$0xf]
    %v1787 = vld [vmem:[#allocation7 + $0xc] sm:$0xf]
    %v1788 = vld [vmem:[#allocation7 + $0x10] sm:$0xf]
    %v1789 = vld [vmem:[#allocation7 + $0x14] sm:$0xf]
    %v1790 = vld [vmem:[#allocation7 + $0x18] sm:$0xf]
    %v1791 = vld [vmem:[#allocation7 + $0x1c] sm:$0xf]
    %v1792 = vld [vmem:[#allocation7 + $0x20] sm:$0xf]
    %v1793 = vld [vmem:[#allocation7 + $0x24] sm:$0xf]
    %v1794 = vld [vmem:[#allocation7 + $0x28] sm:$0xf]
    %v1795 = vld [vmem:[#allocation7 + $0x2c] sm:$0xf]
    %v1796 = vld [vmem:[#allocation7 + $0x30] sm:$0xf]
    %v1797 = vld [vmem:[#allocation7 + $0x34] sm:$0xf]
    %v1798 = vld [vmem:[#allocation7 + $0x38] sm:$0xf]
    %v1799 = vld [vmem:[#allocation7 + $0x3c] sm:$0xf]
    %v1800 = vld [vmem:[#allocation7 + $0x40] sm:$0xf]
    %v1801 = vld [vmem:[#allocation7 + $0x44] sm:$0xf]
    %v1802 = vld [vmem:[#allocation7 + $0x48] sm:$0xf]
    %v1803 = vld [vmem:[#allocation7 + $0x4c] sm:$0xf]
    %v1804 = vld [vmem:[#allocation7 + $0x50] sm:$0xf]
    %v1805 = vld [vmem:[#allocation7 + $0x54] sm:$0xf]
    %v1806 = vld [vmem:[#allocation7 + $0x58] sm:$0xf]
    %v1807 = vld [vmem:[#allocation7 + $0x5c] sm:$0xf]
    %v1808 = vld [vmem:[#allocation7 + $0x60] sm:$0xf]
    %v1809 = vld [vmem:[#allocation7 + $0x64] sm:$0xf]
    %v1810 = vld [vmem:[#allocation7 + $0x68] sm:$0xf]
    %v1811 = vld [vmem:[#allocation7 + $0x6c] sm:$0xf]
    %v1812 = vld [vmem:[#allocation7 + $0x70] sm:$0xf]
    %v1813 = vld [vmem:[#allocation7 + $0x74] sm:$0xf]
    %v1814 = vld [vmem:[#allocation7 + $0x78] sm:$0xf]
    %v1815 = vld [vmem:[#allocation7 + $0x7c] sm:$0xf]
    %v1816 = vld [vmem:[#allocation7 + $0x80] sm:$0xf]
    %v1817 = vld [vmem:[#allocation7 + $0x84] sm:$0xf]
    %v1818 = vld [vmem:[#allocation7 + $0x88] sm:$0xf]
    %v1819 = vld [vmem:[#allocation7 + $0x8c] sm:$0xf]
    %v1820 = vld [vmem:[#allocation7 + $0x90] sm:$0xf]
    %v1821 = vld [vmem:[#allocation7 + $0x94] sm:$0xf]
    %v1822 = vld [vmem:[#allocation7 + $0x98] sm:$0xf]
    %v1823 = vld [vmem:[#allocation7 + $0x9c] sm:$0xf]
    %v1824 = vld [vmem:[#allocation7 + $0xa0] sm:$0xf]
    %v1825 = vld [vmem:[#allocation7 + $0xa4] sm:$0xf]
    %v1826 = vld [vmem:[#allocation7 + $0xa8] sm:$0xf]
    %v1827 = vld [vmem:[#allocation7 + $0xac] sm:$0xf]
    %v1828 = vld [vmem:[#allocation7 + $0xb0] sm:$0xf]
    %v1829 = vld [vmem:[#allocation7 + $0xb4] sm:$0xf]
    %v1830 = vld [vmem:[#allocation7 + $0xb8] sm:$0xf]
    %v1831 = vld [vmem:[#allocation7 + $0xbc] sm:$0xf]
    %v1832 = vld [vmem:[#allocation7 + $0xc0] sm:$0xf]
    %v1833 = vld [vmem:[#allocation7 + $0xc4] sm:$0xf]
    %v1834 = vld [vmem:[#allocation7 + $0xc8] sm:$0xf]
    %v1835 = vld [vmem:[#allocation7 + $0xcc] sm:$0xf]
    %v1836 = vld [vmem:[#allocation7 + $0xd0] sm:$0xf]
    %v1837 = vld [vmem:[#allocation7 + $0xd4] sm:$0xf]
    %v1838 = vld [vmem:[#allocation7 + $0xd8] sm:$0xf]
    %v1839 = vld [vmem:[#allocation7 + $0xdc] sm:$0xf]
    %v1840 = vld [vmem:[#allocation7 + $0xe0] sm:$0xf]
    %v1841 = vld [vmem:[#allocation7 + $0xe4] sm:$0xf]
    %v1842 = vld [vmem:[#allocation7 + $0xe8] sm:$0xf]
    %v1843 = vld [vmem:[#allocation7 + $0xec] sm:$0xf]
    %v1844 = vld [vmem:[#allocation7 + $0xf0] sm:$0xf]
    %v1845 = vld [vmem:[#allocation7 + $0xf4] sm:$0xf]
    %v1846 = vld [vmem:[#allocation7 + $0xf8] sm:$0xf]
    %v1847 = vld [vmem:[#allocation7 + $0xfc] sm:$0xf]
    %v1848 = vld [vmem:[%s4] sm:$0x1]
    %v1850 = vlaneseq
    %v1851 = vshrl.u32 %v1850, 7
    %v1852 = vsub.s32 0, %v1851
    %v1853 = vrot.slane %v1848, %v1852
    %v1919 = vunpack.c.l.b16 %v1784
    %v1920 = vunpack.c.l.b16 %v1785
    %v1921 = vunpack.c.l.b16 %v1786
    %v1922 = vunpack.c.l.b16 %v1787
    %v1923 = vunpack.c.l.b16 %v1788
    %v1924 = vunpack.c.l.b16 %v1789
    %v1925 = vunpack.c.l.b16 %v1790
    %v1926 = vunpack.c.l.b16 %v1791
    %v1927 = vunpack.c.l.b16 %v1792
    %v1928 = vunpack.c.l.b16 %v1793
    %v1929 = vunpack.c.l.b16 %v1794
    %v1930 = vunpack.c.l.b16 %v1795
    %v1931 = vunpack.c.l.b16 %v1796
    %v1932 = vunpack.c.l.b16 %v1797
    %v1933 = vunpack.c.l.b16 %v1798
    %v1934 = vunpack.c.l.b16 %v1799
    %v1935 = vunpack.c.l.b16 %v1800
    %v1936 = vunpack.c.l.b16 %v1801
    %v1937 = vunpack.c.l.b16 %v1802
    %v1938 = vunpack.c.l.b16 %v1803
    %v1939 = vunpack.c.l.b16 %v1804
    %v1940 = vunpack.c.l.b16 %v1805
    %v1941 = vunpack.c.l.b16 %v1806
    %v1942 = vunpack.c.l.b16 %v1807
    %v1943 = vunpack.c.l.b16 %v1808
    %v1944 = vunpack.c.l.b16 %v1809
    %v1945 = vunpack.c.l.b16 %v1810
    %v1946 = vunpack.c.l.b16 %v1811
    %v1947 = vunpack.c.l.b16 %v1812
    %v1948 = vunpack.c.l.b16 %v1813
    %v1949 = vunpack.c.l.b16 %v1814
    %v1950 = vunpack.c.l.b16 %v1815
    %v1951 = vunpack.c.l.b16 %v1816
    %v1952 = vunpack.c.l.b16 %v1817
    %v1953 = vunpack.c.l.b16 %v1818
    %v1954 = vunpack.c.l.b16 %v1819
    %v1955 = vunpack.c.l.b16 %v1820
    %v1956 = vunpack.c.l.b16 %v1821
    %v1957 = vunpack.c.l.b16 %v1822
    %v1958 = vunpack.c.l.b16 %v1823
    %v1959 = vunpack.c.l.b16 %v1824
    %v1960 = vunpack.c.l.b16 %v1825
    %v1961 = vunpack.c.l.b16 %v1826
    %v1962 = vunpack.c.l.b16 %v1827
    %v1963 = vunpack.c.l.b16 %v1828
    %v1964 = vunpack.c.l.b16 %v1829
    %v1965 = vunpack.c.l.b16 %v1830
    %v1966 = vunpack.c.l.b16 %v1831
    %v1967 = vunpack.c.l.b16 %v1832
    %v1968 = vunpack.c.l.b16 %v1833
    %v1969 = vunpack.c.l.b16 %v1834
    %v1970 = vunpack.c.l.b16 %v1835
    %v1971 = vunpack.c.l.b16 %v1836
    %v1972 = vunpack.c.l.b16 %v1837
    %v1973 = vunpack.c.l.b16 %v1838
    %v1974 = vunpack.c.l.b16 %v1839
    %v1975 = vunpack.c.l.b16 %v1840
    %v1976 = vunpack.c.l.b16 %v1841
    %v1977 = vunpack.c.l.b16 %v1842
    %v1978 = vunpack.c.l.b16 %v1843
    %v1979 = vunpack.c.l.b16 %v1844
    %v1980 = vunpack.c.l.b16 %v1845
    %v1981 = vunpack.c.l.b16 %v1846
    %v1982 = vunpack.c.l.b16 %v1847
    %v1983 = vpack.c.b16 %v1920, %v1919
    %v1984 = vpack.c.b16 %v1922, %v1921
    %v1985 = vpack.c.b16 %v1924, %v1923
    %v1986 = vpack.c.b16 %v1926, %v1925
    %v1987 = vpack.c.b16 %v1928, %v1927
    %v1988 = vpack.c.b16 %v1930, %v1929
    %v1989 = vpack.c.b16 %v1932, %v1931
    %v1990 = vpack.c.b16 %v1934, %v1933
    %v1991 = vpack.c.b16 %v1936, %v1935
    %v1992 = vpack.c.b16 %v1938, %v1937
    %v1993 = vpack.c.b16 %v1940, %v1939
    %v1994 = vpack.c.b16 %v1942, %v1941
    %v1995 = vpack.c.b16 %v1944, %v1943
    %v1996 = vpack.c.b16 %v1946, %v1945
    %v1997 = vpack.c.b16 %v1948, %v1947
    %v1998 = vpack.c.b16 %v1950, %v1949
    %v1999 = vpack.c.b16 %v1952, %v1951
    %v2000 = vpack.c.b16 %v1954, %v1953
    %v2001 = vpack.c.b16 %v1956, %v1955
    %v2002 = vpack.c.b16 %v1958, %v1957
    %v2003 = vpack.c.b16 %v1960, %v1959
    %v2004 = vpack.c.b16 %v1962, %v1961
    %v2005 = vpack.c.b16 %v1964, %v1963
    %v2006 = vpack.c.b16 %v1966, %v1965
    %v2007 = vpack.c.b16 %v1968, %v1967
    %v2008 = vpack.c.b16 %v1970, %v1969
    %v2009 = vpack.c.b16 %v1972, %v1971
    %v2010 = vpack.c.b16 %v1974, %v1973
    %v2011 = vpack.c.b16 %v1976, %v1975
    %v2012 = vpack.c.b16 %v1978, %v1977
    %v2013 = vpack.c.b16 %v1980, %v1979
    %v2014 = vpack.c.b16 %v1982, %v1981
    %2047 = vmatprep.subr.bf16.mxu0 0
    %2048 = vmatpush1.bf16.msra.mxu0 %v1983
    %2049 = vmatprep.subr.bf16.mxu0 0
    %2050 = vmatpush1.bf16.msra.mxu0 %v1984
    %2051 = vmatprep.subr.bf16.mxu0 0
    %2052 = vmatpush1.bf16.msra.mxu0 %v1985
    %2053 = vmatprep.subr.bf16.mxu0 0
    %2054 = vmatpush1.bf16.msra.mxu0 %v1986
    %2055 = vmatprep.subr.bf16.mxu0 0
    %2056 = vmatpush1.bf16.msra.mxu0 %v1987
    %2057 = vmatprep.subr.bf16.mxu0 0
    %2058 = vmatpush1.bf16.msra.mxu0 %v1988
    %2059 = vmatprep.subr.bf16.mxu0 0
    %2060 = vmatpush1.bf16.msra.mxu0 %v1989
    %2061 = vmatprep.subr.bf16.mxu0 0
    %2062 = vmatpush1.bf16.msra.mxu0 %v1990
    %2063 = vmatprep.subr.bf16.mxu0 0
    %2064 = vmatpush1.bf16.msra.mxu0 %v1991
    %2065 = vmatprep.subr.bf16.mxu0 0
    %2066 = vmatpush1.bf16.msra.mxu0 %v1992
    %2067 = vmatprep.subr.bf16.mxu0 0
    %2068 = vmatpush1.bf16.msra.mxu0 %v1993
    %2069 = vmatprep.subr.bf16.mxu0 0
    %2070 = vmatpush1.bf16.msra.mxu0 %v1994
    %2071 = vmatprep.subr.bf16.mxu0 0
    %2072 = vmatpush1.bf16.msra.mxu0 %v1995
    %2073 = vmatprep.subr.bf16.mxu0 0
    %2074 = vmatpush1.bf16.msra.mxu0 %v1996
    %2075 = vmatprep.subr.bf16.mxu0 0
    %2076 = vmatpush1.bf16.msra.mxu0 %v1997
    %2077 = vmatprep.subr.bf16.mxu0 0
    %2078 = vmatpush1.bf16.msra.mxu0 %v1998
    %2079 = vmatprep.mubr.bf16.mxu0 %v1781
    %2080 = vmatmul.mubr.bf16.gmra.mrb[0].mxu0 %v1780
    %v2081 = vpop.f32.mrb[0].mxu0
    %v2082 = vadd.f32 %v1853, %v2081
    %v2083 = vpop.f32.mrb[0].mxu0
    %v2084 = vpop.f32.mrb[0].mxu0
    %v2085 = vpop.f32.mrb[0].mxu0
    %2086 = vdwg.mxu0
    %2087 = vmatprep.subr.bf16.mxu0 0
    %2088 = vmatpush1.bf16.msra.mxu0 %v1999
    %2089 = vmatprep.subr.bf16.mxu0 0
    %2090 = vmatpush1.bf16.msra.mxu0 %v2000
    %2091 = vmatprep.subr.bf16.mxu0 0
    %2092 = vmatpush1.bf16.msra.mxu0 %v2001
    %2093 = vmatprep.subr.bf16.mxu0 0
    %2094 = vmatpush1.bf16.msra.mxu0 %v2002
    %2095 = vmatprep.subr.bf16.mxu0 0
    %2096 = vmatpush1.bf16.msra.mxu0 %v2003
    %2097 = vmatprep.subr.bf16.mxu0 0
    %2098 = vmatpush1.bf16.msra.mxu0 %v2004
    %2099 = vmatprep.subr.bf16.mxu0 0
    %2100 = vmatpush1.bf16.msra.mxu0 %v2005
    %2101 = vmatprep.subr.bf16.mxu0 0
    %2102 = vmatpush1.bf16.msra.mxu0 %v2006
    %2103 = vmatprep.subr.bf16.mxu0 0
    %2104 = vmatpush1.bf16.msra.mxu0 %v2007
    %2105 = vmatprep.subr.bf16.mxu0 0
    %2106 = vmatpush1.bf16.msra.mxu0 %v2008
    %2107 = vmatprep.subr.bf16.mxu0 0
    %2108 = vmatpush1.bf16.msra.mxu0 %v2009
    %2109 = vmatprep.subr.bf16.mxu0 0
    %2110 = vmatpush1.bf16.msra.mxu0 %v2010
    %2111 = vmatprep.subr.bf16.mxu0 0
    %2112 = vmatpush1.bf16.msra.mxu0 %v2011
    %2113 = vmatprep.subr.bf16.mxu0 0
    %2114 = vmatpush1.bf16.msra.mxu0 %v2012
    %2115 = vmatprep.subr.bf16.mxu0 0
    %2116 = vmatpush1.bf16.msra.mxu0 %v2013
    %2117 = vmatprep.subr.bf16.mxu0 0
    %2118 = vmatpush1.bf16.msra.mxu0 %v2014
    %2119 = vmatprep.mubr.bf16.mxu0 %v1783
    %2120 = vmatmul.mubr.bf16.gmra.mrb[0].mxu0 %v1782
    %v2121 = vpop.f32.mrb[0].mxu0
    %v2122 = vadd.f32 %v2082, %v2121
    %v2123 = vpop.f32.mrb[0].mxu0
    %v2124 = vpop.f32.mrb[0].mxu0
    %v2125 = vpop.f32.mrb[0].mxu0
    %2126 = vdwg.mxu0
    %2127 = vst [vmem:[#allocation8] sm:$0xff] %v2122
    // Predicated region
    $region34: #{tpu_custom_call.1} parent=1 // pred_check
      _
    $region35: #{tpu_custom_call.1} parent=1 // pred_check_branch
      %2129 = sbr.rel (0) target = $region37
    $region36: #{tpu_custom_call.1} parent=1 // pred_region
      %s2131 = ssub.s32 128, 128
      %2132 = vsyncadd [#allocation4], %s2131
      %s2134 = sshll.u32 [#allocation8], 4
      %s2135 = int_to_ptr.vmem [resolvable:$true] %s2134
      %2137 = dma.vmem_to_hbm [thread:$0]  %s2135, 128, %s5, [#allocation4]
    $region37: #{tpu_custom_call.1} parent=1 // pred_fallthru
      _
    // Predicated region
    $region38: #{tpu_custom_call.1} parent=1 // pred_check
      _
    $region39: #{tpu_custom_call.1} parent=1 // pred_check_branch
      %2139 = sbr.rel (0) target = $region41
    $region40: #{tpu_custom_call.1} parent=1 // pred_region
      %s2141 = ssub.s32 512, 512
      %2142 = vsyncadd [#allocation10], %s2141
      %s2144 = sshll.u32 [#allocation9], 4
      %s2145 = int_to_ptr.vmem [resolvable:$true] %s2144
      %2147 = dma.vmem_to_hbm [thread:$0]  %s2145, 512, %s6, [#allocation10]
    $region41: #{tpu_custom_call.1} parent=1 // pred_fallthru
      _
    // Predicated region
    $region42: #{tpu_custom_call.1} parent=1 // pred_check
      _
    $region43: #{tpu_custom_call.1} parent=1 // pred_check_branch
      %2149 = sbr.rel (0) target = $region45
    $region44: #{tpu_custom_call.1} parent=1 // pred_region
      %2150 = dma.done [#allocation4], 128
    $region45: #{tpu_custom_call.1} parent=1 // pred_fallthru
      _
    // Predicated region
    $region46: #{tpu_custom_call.1} parent=1 // pred_check
      _
    $region47: #{tpu_custom_call.1} parent=1 // pred_check_branch
      %2152 = sbr.rel (0) target = $region49
    $region48: #{tpu_custom_call.1} parent=1 // pred_region
      %2153 = dma.done [#allocation10], 512
    $region49: #{tpu_custom_call.1} parent=1 // pred_fallthru
      _
    %2154 = vsyncpa [#allocation3], 1
    %2155 = vsyncpa [#allocation6], 1
    %2156 = vsyncpa [#allocation4], 1
    %2157 = vsyncpa [#allocation10], 1

</llo_original>
